<compile_context>
chip_gen: v5e
topology: v5e:2x2
jax: 0.10.0
libtpu: 0.0.40
codegen_flags: <defaults>
</compile_context>

<pallas_src>
import jax
import jax.numpy as jnp
from jax.experimental import pallas as pl
from jax.experimental.pallas import tpu as pltpu

# Hidden sizes from nn.Sequential in My_Model.__init__
LAYER_DIMS = [512, 256, 128, 64, 32, 16, 1]
NUM_LAYERS = len(LAYER_DIMS)          # 7
MAX_OUT = max(LAYER_DIMS)             # 512
BIAS_SLAB_LANES = 8                   # >= NUM_LAYERS, keeps a small 2-D slab


def mlp_kernel(x_ref, *refs):
    """Fused 7-layer MLP, feature-major (batch on the lane axis).

    refs = (w0, ..., w6, bias_slab, out)
      w0..w5     : (out_i, in_i) bf16  (MXU layers)
      w6         : (16, 1)       f32   (VPU tail layer, column form)
      bias_slab  : (512, 8)      f32   (bias i lives in column i, rows 0..out_i-1)
      out        : (1, tb)       f32   (lane-dense row)
    """
    o_ref = refs[-1]
    b_ref = refs[-2]
    w_refs = refs[:-2]

    # x_ref is already feature-major: (D, tb).  bf16 into the MXU.
    h = x_ref[...].astype(jnp.bfloat16)

    # Hidden layers 0..5: MXU matmul (bf16 in, f32 acc), f32 bias + ReLU,
    # bf16 storage of the intermediate (halves VMEM/vreg footprint).
    for i in range(NUM_LAYERS - 1):
        out_i = LAYER_DIMS[i]
        acc = jnp.dot(w_refs[i][...], h,
                      preferred_element_type=jnp.float32)      # (out_i, tb) f32
        b_i = b_ref[0:out_i, i:i + 1]                            # (out_i, 1) f32
        h = jnp.maximum(acc + b_i, 0.0).astype(jnp.bfloat16)    # (out_i, tb) bf16

    # Final 16 -> 1 layer: VPU broadcast-multiply + sublane reduction.
    # No MXU pass, no transpose; result is natively the lane-dense (1, tb) row.
    w_last = w_refs[-1][...]                                     # (16, 1) f32
    b_last = b_ref[0:1, NUM_LAYERS - 1:NUM_LAYERS]               # (1, 1)  f32
    out_row = jnp.sum(h.astype(jnp.float32) * w_last,
                      axis=0, keepdims=True) + b_last            # (1, tb) f32
    o_ref[...] = out_row.astype(o_ref.dtype)


def init_params(key, input_dim):
    """Deterministic init mimicking PyTorch's default Linear init
    (uniform in +/- 1/sqrt(fan_in)); natural PyTorch layout:
    weight (out, in) f32, bias (out,) f32."""
    dims = [input_dim] + LAYER_DIMS
    params = []
    for i in range(len(dims) - 1):
        fan_in, fan_out = dims[i], dims[i + 1]
        key, kw, kb = jax.random.split(key, 3)
        bound = 1.0 / (fan_in ** 0.5)
        w = jax.random.uniform(kw, (fan_out, fan_in), jnp.float32, -bound, bound)
        b = jax.random.uniform(kb, (fan_out,), jnp.float32, -bound, bound)
        params.append((w, b))
    return params


def prepare_params(params):
    """Convert natural-layout params into kernel-ready arrays."""
    weights = []
    for i, (w, _) in enumerate(params):
        if i < NUM_LAYERS - 1:
            weights.append(w.astype(jnp.bfloat16))                     # (out, in) bf16
        else:
            weights.append(w.reshape(-1, 1).astype(jnp.float32))       # (16, 1) f32
    bias_slab = jnp.zeros((MAX_OUT, BIAS_SLAB_LANES), jnp.float32)
    for i, (_, b) in enumerate(params):
        bias_slab = bias_slab.at[: b.shape[0], i].set(b)
    return weights, bias_slab


def my_model_forward(x, weights, bias_slab, *, num_tiles=1):
    """Run the fused MLP kernel.

    num_tiles=1 (single grid step) is optimal on single-TensorCore parts
    (v5e / v6e); on v7x (2 TCs) pass num_tiles=2 so the "parallel" batch axis
    gives exactly one tile per core.  Per-tile activations (< a few MiB f32)
    fit trivially in VMEM on all chips.
    """
    B, D = x.shape
    assert B % num_tiles == 0, "batch must divide evenly into tiles"
    tb = B // num_tiles
    assert tb == B or tb % 128 == 0, "per-tile batch must be a multiple of 128"

    # Feature-major input: batch on the lane axis; transposed once by XLA.
    x_t = jnp.transpose(x)                                      # (D, B)

    in_specs = [pl.BlockSpec((D, tb), lambda i: (0, i))]
    # All parameters whole-array VMEM-resident (no per-step DMA bookkeeping).
    in_specs += [pl.BlockSpec(memory_space=pltpu.MemorySpace.VMEM)] * (len(weights) + 1)
    out_spec = pl.BlockSpec((1, tb), lambda i: (0, i))          # lane-dense rows

    dims = [D] + LAYER_DIMS
    flops = 2 * B * sum(dims[i] * dims[i + 1] for i in range(len(dims) - 1))
    param_bytes = (sum(int(w.size) * w.dtype.itemsize for w in weights)
                   + int(bias_slab.size) * 4)
    bytes_accessed = B * D * 4 + B * 4 + param_bytes

    out2d = pl.pallas_call(
        mlp_kernel,
        out_shape=jax.ShapeDtypeStruct((1, B), jnp.float32),
        grid=(num_tiles,),
        in_specs=in_specs,
        out_specs=out_spec,
        compiler_params=pltpu.CompilerParams(
            dimension_semantics=("parallel",),
        ),
        cost_estimate=pl.CostEstimate(
            flops=flops, transcendentals=0, bytes_accessed=bytes_accessed),
    )(x_t, *weights, bias_slab)

    return out2d.reshape(B, 1)


def reference_forward(x, params):
    """Pure-JAX reference mirroring the kernel numerics: bf16 weights and
    activations into each matmul layer, f32 accumulation / bias / ReLU,
    f32 final (VPU) layer."""
    h = x.astype(jnp.bfloat16).astype(jnp.float32)
    for w, b in params[:-1]:
        w_q = w.astype(jnp.bfloat16).astype(jnp.float32)
        h = jnp.maximum(h @ w_q.T + b, 0.0)
        h = h.astype(jnp.bfloat16).astype(jnp.float32)
    w_last, b_last = params[-1]                                  # (1, 16), (1,)
    return h @ w_last.astype(jnp.float32).T + b_last             # (B, 1)


if __name__ == "__main__":
    key = jax.random.PRNGKey(0)
    k_x, k_p = jax.random.split(key)

    batch = 128          # small, lane-dense (one 128-wide output row)
    input_dim = 32

    x = jax.random.normal(k_x, (batch, input_dim), jnp.float32)
    params = init_params(k_p, input_dim)
    weights, bias_slab = prepare_params(params)

    out = my_model_forward(x, weights, bias_slab, num_tiles=1)   # grid = 1
    out = jax.block_until_ready(out)

    ref = reference_forward(x, params)
    assert out.shape == (batch, 1), out.shape
    assert jnp.allclose(out, ref, atol=2e-2, rtol=2e-2), "mismatch vs reference"

    print("KERNEL_OK")
</pallas_src>

<mosaic_0001>
module attributes {stable_mosaic.version = 11 : i64} {
  func.func @mlp_kernel(%arg0: i32, %arg1: memref<32x128xf32, #tpu.memory_space<vmem>>, %arg2: memref<512x32xbf16, #tpu.memory_space<vmem>>, %arg3: memref<256x512xbf16, #tpu.memory_space<vmem>>, %arg4: memref<128x256xbf16, #tpu.memory_space<vmem>>, %arg5: memref<64x128xbf16, #tpu.memory_space<vmem>>, %arg6: memref<32x64xbf16, #tpu.memory_space<vmem>>, %arg7: memref<16x32xbf16, #tpu.memory_space<vmem>>, %arg8: memref<16x1xf32, #tpu.memory_space<vmem>>, %arg9: memref<512x8xf32, #tpu.memory_space<vmem>>, %arg10: memref<1x128xf32, #tpu.memory_space<vmem>>) attributes {dimension_semantics = [#tpu.dimension_semantics<parallel>], iteration_bounds = array<i64: 1>, scalar_prefetch = 0 : i64, scratch_operands = 0 : i64, tpu.core_type = #tpu.core_type<tc>, window_params = [{transform_indices = @transform_0, window_bounds = array<i64: 32, 128>}, {pipeline_mode = #tpu.pipeline_mode<synchronous>, transform_indices = @transform_1, window_bounds = array<i64: 512, 32>}, {pipeline_mode = #tpu.pipeline_mode<synchronous>, transform_indices = @transform_2, window_bounds = array<i64: 256, 512>}, {pipeline_mode = #tpu.pipeline_mode<synchronous>, transform_indices = @transform_3, window_bounds = array<i64: 128, 256>}, {pipeline_mode = #tpu.pipeline_mode<synchronous>, transform_indices = @transform_4, window_bounds = array<i64: 64, 128>}, {pipeline_mode = #tpu.pipeline_mode<synchronous>, transform_indices = @transform_5, window_bounds = array<i64: 32, 64>}, {pipeline_mode = #tpu.pipeline_mode<synchronous>, transform_indices = @transform_6, window_bounds = array<i64: 16, 32>}, {pipeline_mode = #tpu.pipeline_mode<synchronous>, transform_indices = @transform_7, window_bounds = array<i64: 16, 1>}, {pipeline_mode = #tpu.pipeline_mode<synchronous>, transform_indices = @transform_8, window_bounds = array<i64: 512, 8>}, {transform_indices = @transform_9, window_bounds = array<i64: 1, 128>}]} {
    %c0 = arith.constant 0 : index
    %c0_0 = arith.constant 0 : index
    %0 = vector.load %arg1[%c0, %c0_0] : memref<32x128xf32, #tpu.memory_space<vmem>>, vector<32x128xf32>
    %1 = arith.truncf %0 : vector<32x128xf32> to vector<32x128xbf16>
    %c0_1 = arith.constant 0 : index
    %c0_2 = arith.constant 0 : index
    %2 = vector.load %arg2[%c0_1, %c0_2] : memref<512x32xbf16, #tpu.memory_space<vmem>>, vector<512x32xbf16>
    %cst = arith.constant dense<0.000000e+00> : vector<512x128xf32>
    %3 = tpu.matmul %2, %1, %cst {dimension_numbers = #tpu.dot_dimension_numbers<[1], [0], [0], [1], [0, 0, 1, 1], [], []>} : vector<512x32xbf16>, vector<32x128xbf16>, vector<512x128xf32> -> vector<512x128xf32>
    %c0_3 = arith.constant 0 : index
    %c0_4 = arith.constant 0 : index
    %4 = vector.load %arg9[%c0_3, %c0_4] : memref<512x8xf32, #tpu.memory_space<vmem>>, vector<512x1xf32>
    %5 = vector.broadcast %4 : vector<512x1xf32> to vector<512x128xf32>
    %6 = arith.addf %3, %5 : vector<512x128xf32>
    %cst_5 = arith.constant 0.000000e+00 : f32
    %7 = vector.broadcast %cst_5 : f32 to vector<512x128xf32>
    %8 = arith.maximumf %6, %7 : vector<512x128xf32>
    %9 = arith.truncf %8 : vector<512x128xf32> to vector<512x128xbf16>
    %c0_6 = arith.constant 0 : index
    %c0_7 = arith.constant 0 : index
    %10 = vector.load %arg3[%c0_6, %c0_7] : memref<256x512xbf16, #tpu.memory_space<vmem>>, vector<256x512xbf16>
    %cst_8 = arith.constant dense<0.000000e+00> : vector<256x128xf32>
    %11 = tpu.matmul %10, %9, %cst_8 {dimension_numbers = #tpu.dot_dimension_numbers<[1], [0], [0], [1], [0, 0, 1, 1], [], []>} : vector<256x512xbf16>, vector<512x128xbf16>, vector<256x128xf32> -> vector<256x128xf32>
    %c0_9 = arith.constant 0 : index
    %c1 = arith.constant 1 : index
    %12 = vector.load %arg9[%c0_9, %c1] : memref<512x8xf32, #tpu.memory_space<vmem>>, vector<256x1xf32>
    %13 = vector.broadcast %12 : vector<256x1xf32> to vector<256x128xf32>
    %14 = arith.addf %11, %13 : vector<256x128xf32>
    %cst_10 = arith.constant 0.000000e+00 : f32
    %15 = vector.broadcast %cst_10 : f32 to vector<256x128xf32>
    %16 = arith.maximumf %14, %15 : vector<256x128xf32>
    %17 = arith.truncf %16 : vector<256x128xf32> to vector<256x128xbf16>
    %c0_11 = arith.constant 0 : index
    %c0_12 = arith.constant 0 : index
    %18 = vector.load %arg4[%c0_11, %c0_12] : memref<128x256xbf16, #tpu.memory_space<vmem>>, vector<128x256xbf16>
    %cst_13 = arith.constant dense<0.000000e+00> : vector<128x128xf32>
    %19 = tpu.matmul %18, %17, %cst_13 {dimension_numbers = #tpu.dot_dimension_numbers<[1], [0], [0], [1], [0, 0, 1, 1], [], []>} : vector<128x256xbf16>, vector<256x128xbf16>, vector<128x128xf32> -> vector<128x128xf32>
    %c0_14 = arith.constant 0 : index
    %c2 = arith.constant 2 : index
    %20 = vector.load %arg9[%c0_14, %c2] : memref<512x8xf32, #tpu.memory_space<vmem>>, vector<128x1xf32>
    %21 = vector.broadcast %20 : vector<128x1xf32> to vector<128x128xf32>
    %22 = arith.addf %19, %21 : vector<128x128xf32>
    %cst_15 = arith.constant 0.000000e+00 : f32
    %23 = vector.broadcast %cst_15 : f32 to vector<128x128xf32>
    %24 = arith.maximumf %22, %23 : vector<128x128xf32>
    %25 = arith.truncf %24 : vector<128x128xf32> to vector<128x128xbf16>
    %c0_16 = arith.constant 0 : index
    %c0_17 = arith.constant 0 : index
    %26 = vector.load %arg5[%c0_16, %c0_17] : memref<64x128xbf16, #tpu.memory_space<vmem>>, vector<64x128xbf16>
    %cst_18 = arith.constant dense<0.000000e+00> : vector<64x128xf32>
    %27 = tpu.matmul %26, %25, %cst_18 {dimension_numbers = #tpu.dot_dimension_numbers<[1], [0], [0], [1], [0, 0, 1, 1], [], []>} : vector<64x128xbf16>, vector<128x128xbf16>, vector<64x128xf32> -> vector<64x128xf32>
    %c0_19 = arith.constant 0 : index
    %c3 = arith.constant 3 : index
    %28 = vector.load %arg9[%c0_19, %c3] : memref<512x8xf32, #tpu.memory_space<vmem>>, vector<64x1xf32>
    %29 = vector.broadcast %28 : vector<64x1xf32> to vector<64x128xf32>
    %30 = arith.addf %27, %29 : vector<64x128xf32>
    %cst_20 = arith.constant 0.000000e+00 : f32
    %31 = vector.broadcast %cst_20 : f32 to vector<64x128xf32>
    %32 = arith.maximumf %30, %31 : vector<64x128xf32>
    %33 = arith.truncf %32 : vector<64x128xf32> to vector<64x128xbf16>
    %c0_21 = arith.constant 0 : index
    %c0_22 = arith.constant 0 : index
    %34 = vector.load %arg6[%c0_21, %c0_22] : memref<32x64xbf16, #tpu.memory_space<vmem>>, vector<32x64xbf16>
    %cst_23 = arith.constant dense<0.000000e+00> : vector<32x128xf32>
    %35 = tpu.matmul %34, %33, %cst_23 {dimension_numbers = #tpu.dot_dimension_numbers<[1], [0], [0], [1], [0, 0, 1, 1], [], []>} : vector<32x64xbf16>, vector<64x128xbf16>, vector<32x128xf32> -> vector<32x128xf32>
    %c0_24 = arith.constant 0 : index
    %c4 = arith.constant 4 : index
    %36 = vector.load %arg9[%c0_24, %c4] : memref<512x8xf32, #tpu.memory_space<vmem>>, vector<32x1xf32>
    %37 = vector.broadcast %36 : vector<32x1xf32> to vector<32x128xf32>
    %38 = arith.addf %35, %37 : vector<32x128xf32>
    %cst_25 = arith.constant 0.000000e+00 : f32
    %39 = vector.broadcast %cst_25 : f32 to vector<32x128xf32>
    %40 = arith.maximumf %38, %39 : vector<32x128xf32>
    %41 = arith.truncf %40 : vector<32x128xf32> to vector<32x128xbf16>
    %c0_26 = arith.constant 0 : index
    %c0_27 = arith.constant 0 : index
    %42 = vector.load %arg7[%c0_26, %c0_27] : memref<16x32xbf16, #tpu.memory_space<vmem>>, vector<16x32xbf16>
    %cst_28 = arith.constant dense<0.000000e+00> : vector<16x128xf32>
    %43 = tpu.matmul %42, %41, %cst_28 {dimension_numbers = #tpu.dot_dimension_numbers<[1], [0], [0], [1], [0, 0, 1, 1], [], []>} : vector<16x32xbf16>, vector<32x128xbf16>, vector<16x128xf32> -> vector<16x128xf32>
    %c0_29 = arith.constant 0 : index
    %c5 = arith.constant 5 : index
    %44 = vector.load %arg9[%c0_29, %c5] : memref<512x8xf32, #tpu.memory_space<vmem>>, vector<16x1xf32>
    %45 = vector.broadcast %44 : vector<16x1xf32> to vector<16x128xf32>
    %46 = arith.addf %43, %45 : vector<16x128xf32>
    %cst_30 = arith.constant 0.000000e+00 : f32
    %47 = vector.broadcast %cst_30 : f32 to vector<16x128xf32>
    %48 = arith.maximumf %46, %47 : vector<16x128xf32>
    %49 = arith.truncf %48 : vector<16x128xf32> to vector<16x128xbf16>
    %c0_31 = arith.constant 0 : index
    %c0_32 = arith.constant 0 : index
    %50 = vector.load %arg8[%c0_31, %c0_32] : memref<16x1xf32, #tpu.memory_space<vmem>>, vector<16x1xf32>
    %c0_33 = arith.constant 0 : index
    %c6 = arith.constant 6 : index
    %51 = vector.load %arg9[%c0_33, %c6] : memref<512x8xf32, #tpu.memory_space<vmem>>, vector<1x1xf32>
    %52 = arith.extf %49 : vector<16x128xbf16> to vector<16x128xf32>
    %53 = vector.broadcast %50 : vector<16x1xf32> to vector<16x128xf32>
    %54 = arith.mulf %52, %53 : vector<16x128xf32>
    %cst_34 = arith.constant dense<0.000000e+00> : vector<128xf32>
    %55 = vector.multi_reduction <add>, %54, %cst_34 [0] : vector<16x128xf32> to vector<128xf32>
    %56 = vector.shape_cast %55 : vector<128xf32> to vector<1x128xf32>
    %57 = vector.broadcast %51 : vector<1x1xf32> to vector<1x128xf32>
    %58 = arith.addf %56, %57 : vector<1x128xf32>
    %c0_35 = arith.constant 0 : index
    %c0_36 = arith.constant 0 : index
    %59 = vector.load %arg10[%c0_35, %c0_36] : memref<1x128xf32, #tpu.memory_space<vmem>>, vector<1x128xf32>
    tpu.vector_store %arg10[%c0_35, %c0_36], %58 {strides = array<i32>} : memref<1x128xf32, #tpu.memory_space<vmem>>, vector<1x128xf32>,
    return
  }
  func.func @transform_0(%arg0: i32) -> (i32, i32) {
    %c0_i32 = arith.constant 0 : i32
    %c0_i32_0 = arith.constant 0 : i32
    return %c0_i32, %arg0 : i32, i32
  }
  func.func @transform_1(%arg0: i32) -> (i32, i32) {
    %c0_i32 = arith.constant 0 : i32
    %c0_i32_0 = arith.constant 0 : i32
    %c0_i32_1 = arith.constant 0 : i32
    return %c0_i32, %c0_i32_0 : i32, i32
  }
  func.func @transform_2(%arg0: i32) -> (i32, i32) {
    %c0_i32 = arith.constant 0 : i32
    %c0_i32_0 = arith.constant 0 : i32
    %c0_i32_1 = arith.constant 0 : i32
    return %c0_i32, %c0_i32_0 : i32, i32
  }
  func.func @transform_3(%arg0: i32) -> (i32, i32) {
    %c0_i32 = arith.constant 0 : i32
    %c0_i32_0 = arith.constant 0 : i32
    %c0_i32_1 = arith.constant 0 : i32
    return %c0_i32, %c0_i32_0 : i32, i32
  }
  func.func @transform_4(%arg0: i32) -> (i32, i32) {
    %c0_i32 = arith.constant 0 : i32
    %c0_i32_0 = arith.constant 0 : i32
    %c0_i32_1 = arith.constant 0 : i32
    return %c0_i32, %c0_i32_0 : i32, i32
  }
  func.func @transform_5(%arg0: i32) -> (i32, i32) {
    %c0_i32 = arith.constant 0 : i32
    %c0_i32_0 = arith.constant 0 : i32
    %c0_i32_1 = arith.constant 0 : i32
    return %c0_i32, %c0_i32_0 : i32, i32
  }
  func.func @transform_6(%arg0: i32) -> (i32, i32) {
    %c0_i32 = arith.constant 0 : i32
    %c0_i32_0 = arith.constant 0 : i32
    %c0_i32_1 = arith.constant 0 : i32
    return %c0_i32, %c0_i32_0 : i32, i32
  }
  func.func @transform_7(%arg0: i32) -> (i32, i32) {
    %c0_i32 = arith.constant 0 : i32
    %c0_i32_0 = arith.constant 0 : i32
    %c0_i32_1 = arith.constant 0 : i32
    return %c0_i32, %c0_i32_0 : i32, i32
  }
  func.func @transform_8(%arg0: i32) -> (i32, i32) {
    %c0_i32 = arith.constant 0 : i32
    %c0_i32_0 = arith.constant 0 : i32
    %c0_i32_1 = arith.constant 0 : i32
    return %c0_i32, %c0_i32_0 : i32, i32
  }
  func.func @transform_9(%arg0: i32) -> (i32, i32) {
    %c0_i32 = arith.constant 0 : i32
    %c0_i32_0 = arith.constant 0 : i32
    return %c0_i32, %arg0 : i32, i32
  }
}

</mosaic_0001>

<llo_original>
// kernel: tpu_custom_call.1
$region0: #{tpu_custom_call.1}
  #allocation0 [shape = 'u32[]', space=smem, size = 0x4, offset = 0x4, fixed_abs, tag = 'smem constant byte address 0x4 - core index']
  #allocation1 [shape = 'u32[72,128]{1,0:T(1,128)}', space=vmem, size = 0x9000, scoped, tag = 'internal scratch']
  %s0 = inlined_call_operand.vmem [shape: f32[32,128], index: 0, kind: input, shape index: {}]
  %s1 = inlined_call_operand.vmem [shape: bf16[512,32], index: 1, kind: input, shape index: {}]
  %s2 = inlined_call_operand.vmem [shape: bf16[256,512], index: 2, kind: input, shape index: {}]
  %s3 = inlined_call_operand.vmem [shape: bf16[128,256], index: 3, kind: input, shape index: {}]
  %s4 = inlined_call_operand.vmem [shape: bf16[64,128], index: 4, kind: input, shape index: {}]
  %s5 = inlined_call_operand.vmem [shape: bf16[32,64], index: 5, kind: input, shape index: {}]
  %s6 = inlined_call_operand.vmem [shape: bf16[16,32], index: 6, kind: input, shape index: {}]
  %s7 = inlined_call_operand.vmem [shape: f32[16,1], index: 7, kind: input, shape index: {}]
  %s8 = inlined_call_operand.vmem [shape: f32[512,8], index: 8, kind: input, shape index: {}]
  %s9 = inlined_call_operand.hbm [shape: f32[1,128], index: 9, kind: output, shape index: {}]
  %s10 = sld [smem:[#allocation0]]
  $region46: #{tpu_custom_call.1} parent=0
    _
  %s12 = ssub.s32 1, %s10
  %s13 = scalar_select 0, %s12, %s10
  $region1: #{tpu_custom_call.1} parent=0
    #allocation2 [shape = 'u8[512]{0}', space=vmem, size = 0x400, scoped, tag = 'output window, operand 0, single buffered']
    #allocation3 [shape = 's32[1]{0}', space=sflag, size = 0x4, scoped, tag = 'scoped memory for tpu_custom_call.1']
    %14 = vsyncpa [#allocation3], 0
    // Predicated region
    $region2: #{tpu_custom_call.1} parent=1 // pred_check
      _
    $region3: #{tpu_custom_call.1} parent=1 // pred_check_branch
      %16 = sbr.rel (0) target = $region5
    $region4: #{tpu_custom_call.1} parent=1 // pred_region
      _
    $region5: #{tpu_custom_call.1} parent=1 // pred_fallthru
      _
    // Predicated region
    $region6: #{tpu_custom_call.1} parent=1 // pred_check
      _
    $region7: #{tpu_custom_call.1} parent=1 // pred_check_branch
      %18 = sbr.rel (0) target = $region9
    $region8: #{tpu_custom_call.1} parent=1 // pred_region
      _
    $region9: #{tpu_custom_call.1} parent=1 // pred_fallthru
      _
    // Predicated region
    $region10: #{tpu_custom_call.1} parent=1 // pred_check
      _
    $region11: #{tpu_custom_call.1} parent=1 // pred_check_branch
      %20 = sbr.rel (0) target = $region13
    $region12: #{tpu_custom_call.1} parent=1 // pred_region
      _
    $region13: #{tpu_custom_call.1} parent=1 // pred_fallthru
      _
    // Predicated region
    $region14: #{tpu_custom_call.1} parent=1 // pred_check
      _
    $region15: #{tpu_custom_call.1} parent=1 // pred_check_branch
      %22 = sbr.rel (0) target = $region17
    $region16: #{tpu_custom_call.1} parent=1 // pred_region
      _
    $region17: #{tpu_custom_call.1} parent=1 // pred_fallthru
      _
    // Predicated region
    $region18: #{tpu_custom_call.1} parent=1 // pred_check
      _
    $region19: #{tpu_custom_call.1} parent=1 // pred_check_branch
      %24 = sbr.rel (0) target = $region21
    $region20: #{tpu_custom_call.1} parent=1 // pred_region
      _
    $region21: #{tpu_custom_call.1} parent=1 // pred_fallthru
      _
    // Predicated region
    $region22: #{tpu_custom_call.1} parent=1 // pred_check
      _
    $region23: #{tpu_custom_call.1} parent=1 // pred_check_branch
      %26 = sbr.rel (0) target = $region25
    $region24: #{tpu_custom_call.1} parent=1 // pred_region
      _
    $region25: #{tpu_custom_call.1} parent=1 // pred_fallthru
      _
    // Predicated region
    $region26: #{tpu_custom_call.1} parent=1 // pred_check
      _
    $region27: #{tpu_custom_call.1} parent=1 // pred_check_branch
      %28 = sbr.rel (0) target = $region29
    $region28: #{tpu_custom_call.1} parent=1 // pred_region
      _
    $region29: #{tpu_custom_call.1} parent=1 // pred_fallthru
      _
    // Predicated region
    $region30: #{tpu_custom_call.1} parent=1 // pred_check
      _
    $region31: #{tpu_custom_call.1} parent=1 // pred_check_branch
      %30 = sbr.rel (0) target = $region33
    $region32: #{tpu_custom_call.1} parent=1 // pred_region
      _
    $region33: #{tpu_custom_call.1} parent=1 // pred_fallthru
      _
    // Predicated region
    $region34: #{tpu_custom_call.1} parent=1 // pred_check
      _
    $region35: #{tpu_custom_call.1} parent=1 // pred_check_branch
      %32 = sbr.rel (0) target = $region37
    $region36: #{tpu_custom_call.1} parent=1 // pred_region
      _
    $region37: #{tpu_custom_call.1} parent=1 // pred_fallthru
      _
    %v34 = vld [vmem:[%s0] sm:$0xff]
    %v35 = vld [vmem:[%s0 + $0x8] sm:$0xff]
    %v36 = vld [vmem:[%s0 + $0x10] sm:$0xff]
    %v37 = vld [vmem:[%s0 + $0x18] sm:$0xff]
    %v38 = vpack.c.bf16 %v35, %v34
    %v39 = vpack.c.bf16 %v37, %v36
    %v40 = vld [vmem:[%s1] sm:$0xf]
    %v41 = vld [vmem:[%s1 + $0x4] sm:$0xf]
    %v42 = vld [vmem:[%s1 + $0x8] sm:$0xf]
    %v43 = vld [vmem:[%s1 + $0xc] sm:$0xf]
    %v44 = vld [vmem:[%s1 + $0x10] sm:$0xf]
    %v45 = vld [vmem:[%s1 + $0x14] sm:$0xf]
    %v46 = vld [vmem:[%s1 + $0x18] sm:$0xf]
    %v47 = vld [vmem:[%s1 + $0x1c] sm:$0xf]
    %v48 = vld [vmem:[%s1 + $0x20] sm:$0xf]
    %v49 = vld [vmem:[%s1 + $0x24] sm:$0xf]
    %v50 = vld [vmem:[%s1 + $0x28] sm:$0xf]
    %v51 = vld [vmem:[%s1 + $0x2c] sm:$0xf]
    %v52 = vld [vmem:[%s1 + $0x30] sm:$0xf]
    %v53 = vld [vmem:[%s1 + $0x34] sm:$0xf]
    %v54 = vld [vmem:[%s1 + $0x38] sm:$0xf]
    %v55 = vld [vmem:[%s1 + $0x3c] sm:$0xf]
    %v56 = vld [vmem:[%s1 + $0x40] sm:$0xf]
    %v57 = vld [vmem:[%s1 + $0x44] sm:$0xf]
    %v58 = vld [vmem:[%s1 + $0x48] sm:$0xf]
    %v59 = vld [vmem:[%s1 + $0x4c] sm:$0xf]
    %v60 = vld [vmem:[%s1 + $0x50] sm:$0xf]
    %v61 = vld [vmem:[%s1 + $0x54] sm:$0xf]
    %v62 = vld [vmem:[%s1 + $0x58] sm:$0xf]
    %v63 = vld [vmem:[%s1 + $0x5c] sm:$0xf]
    %v64 = vld [vmem:[%s1 + $0x60] sm:$0xf]
    %v65 = vld [vmem:[%s1 + $0x64] sm:$0xf]
    %v66 = vld [vmem:[%s1 + $0x68] sm:$0xf]
    %v67 = vld [vmem:[%s1 + $0x6c] sm:$0xf]
    %v68 = vld [vmem:[%s1 + $0x70] sm:$0xf]
    %v69 = vld [vmem:[%s1 + $0x74] sm:$0xf]
    %v70 = vld [vmem:[%s1 + $0x78] sm:$0xf]
    %v71 = vld [vmem:[%s1 + $0x7c] sm:$0xf]
    %v72 = vld [vmem:[%s1 + $0x80] sm:$0xf]
    %v73 = vld [vmem:[%s1 + $0x84] sm:$0xf]
    %v74 = vld [vmem:[%s1 + $0x88] sm:$0xf]
    %v75 = vld [vmem:[%s1 + $0x8c] sm:$0xf]
    %v76 = vld [vmem:[%s1 + $0x90] sm:$0xf]
    %v77 = vld [vmem:[%s1 + $0x94] sm:$0xf]
    %v78 = vld [vmem:[%s1 + $0x98] sm:$0xf]
    %v79 = vld [vmem:[%s1 + $0x9c] sm:$0xf]
    %v80 = vld [vmem:[%s1 + $0xa0] sm:$0xf]
    %v81 = vld [vmem:[%s1 + $0xa4] sm:$0xf]
    %v82 = vld [vmem:[%s1 + $0xa8] sm:$0xf]
    %v83 = vld [vmem:[%s1 + $0xac] sm:$0xf]
    %v84 = vld [vmem:[%s1 + $0xb0] sm:$0xf]
    %v85 = vld [vmem:[%s1 + $0xb4] sm:$0xf]
    %v86 = vld [vmem:[%s1 + $0xb8] sm:$0xf]
    %v87 = vld [vmem:[%s1 + $0xbc] sm:$0xf]
    %v88 = vld [vmem:[%s1 + $0xc0] sm:$0xf]
    %v89 = vld [vmem:[%s1 + $0xc4] sm:$0xf]
    %v90 = vld [vmem:[%s1 + $0xc8] sm:$0xf]
    %v91 = vld [vmem:[%s1 + $0xcc] sm:$0xf]
    %v92 = vld [vmem:[%s1 + $0xd0] sm:$0xf]
    %v93 = vld [vmem:[%s1 + $0xd4] sm:$0xf]
    %v94 = vld [vmem:[%s1 + $0xd8] sm:$0xf]
    %v95 = vld [vmem:[%s1 + $0xdc] sm:$0xf]
    %v96 = vld [vmem:[%s1 + $0xe0] sm:$0xf]
    %v97 = vld [vmem:[%s1 + $0xe4] sm:$0xf]
    %v98 = vld [vmem:[%s1 + $0xe8] sm:$0xf]
    %v99 = vld [vmem:[%s1 + $0xec] sm:$0xf]
    %v100 = vld [vmem:[%s1 + $0xf0] sm:$0xf]
    %v101 = vld [vmem:[%s1 + $0xf4] sm:$0xf]
    %v102 = vld [vmem:[%s1 + $0xf8] sm:$0xf]
    %v103 = vld [vmem:[%s1 + $0xfc] sm:$0xf]
    %v104 = vld [vmem:[%s8] sm:$0xff]
    %v105 = vld [vmem:[%s8 + $0x8] sm:$0xff]
    %v106 = vld [vmem:[%s8 + $0x10] sm:$0xff]
    %v107 = vld [vmem:[%s8 + $0x18] sm:$0xff]
    %v108 = vld [vmem:[%s8 + $0x20] sm:$0xff]
    %v109 = vld [vmem:[%s8 + $0x28] sm:$0xff]
    %v110 = vld [vmem:[%s8 + $0x30] sm:$0xff]
    %v111 = vld [vmem:[%s8 + $0x38] sm:$0xff]
    %v112 = vld [vmem:[%s8 + $0x40] sm:$0xff]
    %v113 = vld [vmem:[%s8 + $0x48] sm:$0xff]
    %v114 = vld [vmem:[%s8 + $0x50] sm:$0xff]
    %v115 = vld [vmem:[%s8 + $0x58] sm:$0xff]
    %v116 = vld [vmem:[%s8 + $0x60] sm:$0xff]
    %v117 = vld [vmem:[%s8 + $0x68] sm:$0xff]
    %v118 = vld [vmem:[%s8 + $0x70] sm:$0xff]
    %v119 = vld [vmem:[%s8 + $0x78] sm:$0xff]
    %v120 = vld [vmem:[%s8 + $0x80] sm:$0xff]
    %v121 = vld [vmem:[%s8 + $0x88] sm:$0xff]
    %v122 = vld [vmem:[%s8 + $0x90] sm:$0xff]
    %v123 = vld [vmem:[%s8 + $0x98] sm:$0xff]
    %v124 = vld [vmem:[%s8 + $0xa0] sm:$0xff]
    %v125 = vld [vmem:[%s8 + $0xa8] sm:$0xff]
    %v126 = vld [vmem:[%s8 + $0xb0] sm:$0xff]
    %v127 = vld [vmem:[%s8 + $0xb8] sm:$0xff]
    %v128 = vld [vmem:[%s8 + $0xc0] sm:$0xff]
    %v129 = vld [vmem:[%s8 + $0xc8] sm:$0xff]
    %v130 = vld [vmem:[%s8 + $0xd0] sm:$0xff]
    %v131 = vld [vmem:[%s8 + $0xd8] sm:$0xff]
    %v132 = vld [vmem:[%s8 + $0xe0] sm:$0xff]
    %v133 = vld [vmem:[%s8 + $0xe8] sm:$0xff]
    %v134 = vld [vmem:[%s8 + $0xf0] sm:$0xff]
    %v135 = vld [vmem:[%s8 + $0xf8] sm:$0xff]
    %v136 = vld [vmem:[%s8 + $0x100] sm:$0xff]
    %v137 = vld [vmem:[%s8 + $0x108] sm:$0xff]
    %v138 = vld [vmem:[%s8 + $0x110] sm:$0xff]
    %v139 = vld [vmem:[%s8 + $0x118] sm:$0xff]
    %v140 = vld [vmem:[%s8 + $0x120] sm:$0xff]
    %v141 = vld [vmem:[%s8 + $0x128] sm:$0xff]
    %v142 = vld [vmem:[%s8 + $0x130] sm:$0xff]
    %v143 = vld [vmem:[%s8 + $0x138] sm:$0xff]
    %v144 = vld [vmem:[%s8 + $0x140] sm:$0xff]
    %v145 = vld [vmem:[%s8 + $0x148] sm:$0xff]
    %v146 = vld [vmem:[%s8 + $0x150] sm:$0xff]
    %v147 = vld [vmem:[%s8 + $0x158] sm:$0xff]
    %v148 = vld [vmem:[%s8 + $0x160] sm:$0xff]
    %v149 = vld [vmem:[%s8 + $0x168] sm:$0xff]
    %v150 = vld [vmem:[%s8 + $0x170] sm:$0xff]
    %v151 = vld [vmem:[%s8 + $0x178] sm:$0xff]
    %v152 = vld [vmem:[%s8 + $0x180] sm:$0xff]
    %v153 = vld [vmem:[%s8 + $0x188] sm:$0xff]
    %v154 = vld [vmem:[%s8 + $0x190] sm:$0xff]
    %v155 = vld [vmem:[%s8 + $0x198] sm:$0xff]
    %v156 = vld [vmem:[%s8 + $0x1a0] sm:$0xff]
    %v157 = vld [vmem:[%s8 + $0x1a8] sm:$0xff]
    %v158 = vld [vmem:[%s8 + $0x1b0] sm:$0xff]
    %v159 = vld [vmem:[%s8 + $0x1b8] sm:$0xff]
    %v160 = vld [vmem:[%s8 + $0x1c0] sm:$0xff]
    %v161 = vld [vmem:[%s8 + $0x1c8] sm:$0xff]
    %v162 = vld [vmem:[%s8 + $0x1d0] sm:$0xff]
    %v163 = vld [vmem:[%s8 + $0x1d8] sm:$0xff]
    %v164 = vld [vmem:[%s8 + $0x1e0] sm:$0xff]
    %v165 = vld [vmem:[%s8 + $0x1e8] sm:$0xff]
    %v166 = vld [vmem:[%s8 + $0x1f0] sm:$0xff]
    %v167 = vld [vmem:[%s8 + $0x1f8] sm:$0xff]
    %169 = vset.pattern.permute.xlu0 0
    %170 = vperm.xlu0 %169, %v104
    %v171 = vpop.permute.xlu0 %170
    %174 = vset.pattern.permute.xlu0 0
    %175 = vperm.xlu0 %174, %v105
    %v176 = vpop.permute.xlu0 %175
    %179 = vset.pattern.permute.xlu0 0
    %180 = vperm.xlu0 %179, %v106
    %v181 = vpop.permute.xlu0 %180
    %184 = vset.pattern.permute.xlu0 0
    %185 = vperm.xlu0 %184, %v107
    %v186 = vpop.permute.xlu0 %185
    %189 = vset.pattern.permute.xlu0 0
    %190 = vperm.xlu0 %189, %v108
    %v191 = vpop.permute.xlu0 %190
    %194 = vset.pattern.permute.xlu0 0
    %195 = vperm.xlu0 %194, %v109
    %v196 = vpop.permute.xlu0 %195
    %199 = vset.pattern.permute.xlu0 0
    %200 = vperm.xlu0 %199, %v110
    %v201 = vpop.permute.xlu0 %200
    %204 = vset.pattern.permute.xlu0 0
    %205 = vperm.xlu0 %204, %v111
    %v206 = vpop.permute.xlu0 %205
    %209 = vset.pattern.permute.xlu0 0
    %210 = vperm.xlu0 %209, %v112
    %v211 = vpop.permute.xlu0 %210
    %214 = vset.pattern.permute.xlu0 0
    %215 = vperm.xlu0 %214, %v113
    %v216 = vpop.permute.xlu0 %215
    %219 = vset.pattern.permute.xlu0 0
    %220 = vperm.xlu0 %219, %v114
    %v221 = vpop.permute.xlu0 %220
    %224 = vset.pattern.permute.xlu0 0
    %225 = vperm.xlu0 %224, %v115
    %v226 = vpop.permute.xlu0 %225
    %229 = vset.pattern.permute.xlu0 0
    %230 = vperm.xlu0 %229, %v116
    %v231 = vpop.permute.xlu0 %230
    %234 = vset.pattern.permute.xlu0 0
    %235 = vperm.xlu0 %234, %v117
    %v236 = vpop.permute.xlu0 %235
    %239 = vset.pattern.permute.xlu0 0
    %240 = vperm.xlu0 %239, %v118
    %v241 = vpop.permute.xlu0 %240
    %244 = vset.pattern.permute.xlu0 0
    %245 = vperm.xlu0 %244, %v119
    %v246 = vpop.permute.xlu0 %245
    %249 = vset.pattern.permute.xlu0 0
    %250 = vperm.xlu0 %249, %v120
    %v251 = vpop.permute.xlu0 %250
    %254 = vset.pattern.permute.xlu0 0
    %255 = vperm.xlu0 %254, %v121
    %v256 = vpop.permute.xlu0 %255
    %259 = vset.pattern.permute.xlu0 0
    %260 = vperm.xlu0 %259, %v122
    %v261 = vpop.permute.xlu0 %260
    %264 = vset.pattern.permute.xlu0 0
    %265 = vperm.xlu0 %264, %v123
    %v266 = vpop.permute.xlu0 %265
    %269 = vset.pattern.permute.xlu0 0
    %270 = vperm.xlu0 %269, %v124
    %v271 = vpop.permute.xlu0 %270
    %274 = vset.pattern.permute.xlu0 0
    %275 = vperm.xlu0 %274, %v125
    %v276 = vpop.permute.xlu0 %275
    %279 = vset.pattern.permute.xlu0 0
    %280 = vperm.xlu0 %279, %v126
    %v281 = vpop.permute.xlu0 %280
    %284 = vset.pattern.permute.xlu0 0
    %285 = vperm.xlu0 %284, %v127
    %v286 = vpop.permute.xlu0 %285
    %289 = vset.pattern.permute.xlu0 0
    %290 = vperm.xlu0 %289, %v128
    %v291 = vpop.permute.xlu0 %290
    %294 = vset.pattern.permute.xlu0 0
    %295 = vperm.xlu0 %294, %v129
    %v296 = vpop.permute.xlu0 %295
    %299 = vset.pattern.permute.xlu0 0
    %300 = vperm.xlu0 %299, %v130
    %v301 = vpop.permute.xlu0 %300
    %304 = vset.pattern.permute.xlu0 0
    %305 = vperm.xlu0 %304, %v131
    %v306 = vpop.permute.xlu0 %305
    %309 = vset.pattern.permute.xlu0 0
    %310 = vperm.xlu0 %309, %v132
    %v311 = vpop.permute.xlu0 %310
    %314 = vset.pattern.permute.xlu0 0
    %315 = vperm.xlu0 %314, %v133
    %v316 = vpop.permute.xlu0 %315
    %319 = vset.pattern.permute.xlu0 0
    %320 = vperm.xlu0 %319, %v134
    %v321 = vpop.permute.xlu0 %320
    %324 = vset.pattern.permute.xlu0 0
    %325 = vperm.xlu0 %324, %v135
    %v326 = vpop.permute.xlu0 %325
    %329 = vset.pattern.permute.xlu0 0
    %330 = vperm.xlu0 %329, %v136
    %v331 = vpop.permute.xlu0 %330
    %334 = vset.pattern.permute.xlu0 0
    %335 = vperm.xlu0 %334, %v137
    %v336 = vpop.permute.xlu0 %335
    %339 = vset.pattern.permute.xlu0 0
    %340 = vperm.xlu0 %339, %v138
    %v341 = vpop.permute.xlu0 %340
    %344 = vset.pattern.permute.xlu0 0
    %345 = vperm.xlu0 %344, %v139
    %v346 = vpop.permute.xlu0 %345
    %349 = vset.pattern.permute.xlu0 0
    %350 = vperm.xlu0 %349, %v140
    %v351 = vpop.permute.xlu0 %350
    %354 = vset.pattern.permute.xlu0 0
    %355 = vperm.xlu0 %354, %v141
    %v356 = vpop.permute.xlu0 %355
    %359 = vset.pattern.permute.xlu0 0
    %360 = vperm.xlu0 %359, %v142
    %v361 = vpop.permute.xlu0 %360
    %364 = vset.pattern.permute.xlu0 0
    %365 = vperm.xlu0 %364, %v143
    %v366 = vpop.permute.xlu0 %365
    %369 = vset.pattern.permute.xlu0 0
    %370 = vperm.xlu0 %369, %v144
    %v371 = vpop.permute.xlu0 %370
    %374 = vset.pattern.permute.xlu0 0
    %375 = vperm.xlu0 %374, %v145
    %v376 = vpop.permute.xlu0 %375
    %379 = vset.pattern.permute.xlu0 0
    %380 = vperm.xlu0 %379, %v146
    %v381 = vpop.permute.xlu0 %380
    %384 = vset.pattern.permute.xlu0 0
    %385 = vperm.xlu0 %384, %v147
    %v386 = vpop.permute.xlu0 %385
    %389 = vset.pattern.permute.xlu0 0
    %390 = vperm.xlu0 %389, %v148
    %v391 = vpop.permute.xlu0 %390
    %394 = vset.pattern.permute.xlu0 0
    %395 = vperm.xlu0 %394, %v149
    %v396 = vpop.permute.xlu0 %395
    %399 = vset.pattern.permute.xlu0 0
    %400 = vperm.xlu0 %399, %v150
    %v401 = vpop.permute.xlu0 %400
    %404 = vset.pattern.permute.xlu0 0
    %405 = vperm.xlu0 %404, %v151
    %v406 = vpop.permute.xlu0 %405
    %409 = vset.pattern.permute.xlu0 0
    %410 = vperm.xlu0 %409, %v152
    %v411 = vpop.permute.xlu0 %410
    %414 = vset.pattern.permute.xlu0 0
    %415 = vperm.xlu0 %414, %v153
    %v416 = vpop.permute.xlu0 %415
    %419 = vset.pattern.permute.xlu0 0
    %420 = vperm.xlu0 %419, %v154
    %v421 = vpop.permute.xlu0 %420
    %424 = vset.pattern.permute.xlu0 0
    %425 = vperm.xlu0 %424, %v155
    %v426 = vpop.permute.xlu0 %425
    %429 = vset.pattern.permute.xlu0 0
    %430 = vperm.xlu0 %429, %v156
    %v431 = vpop.permute.xlu0 %430
    %434 = vset.pattern.permute.xlu0 0
    %435 = vperm.xlu0 %434, %v157
    %v436 = vpop.permute.xlu0 %435
    %439 = vset.pattern.permute.xlu0 0
    %440 = vperm.xlu0 %439, %v158
    %v441 = vpop.permute.xlu0 %440
    %444 = vset.pattern.permute.xlu0 0
    %445 = vperm.xlu0 %444, %v159
    %v446 = vpop.permute.xlu0 %445
    %449 = vset.pattern.permute.xlu0 0
    %450 = vperm.xlu0 %449, %v160
    %v451 = vpop.permute.xlu0 %450
    %454 = vset.pattern.permute.xlu0 0
    %455 = vperm.xlu0 %454, %v161
    %v456 = vpop.permute.xlu0 %455
    %459 = vset.pattern.permute.xlu0 0
    %460 = vperm.xlu0 %459, %v162
    %v461 = vpop.permute.xlu0 %460
    %464 = vset.pattern.permute.xlu0 0
    %465 = vperm.xlu0 %464, %v163
    %v466 = vpop.permute.xlu0 %465
    %469 = vset.pattern.permute.xlu0 0
    %470 = vperm.xlu0 %469, %v164
    %v471 = vpop.permute.xlu0 %470
    %474 = vset.pattern.permute.xlu0 0
    %475 = vperm.xlu0 %474, %v165
    %v476 = vpop.permute.xlu0 %475
    %479 = vset.pattern.permute.xlu0 0
    %480 = vperm.xlu0 %479, %v166
    %v481 = vpop.permute.xlu0 %480
    %484 = vset.pattern.permute.xlu0 0
    %485 = vperm.xlu0 %484, %v167
    %v486 = vpop.permute.xlu0 %485
    %v552 = vunpack.c.l.b16 %v40
    %v553 = vunpack.c.l.b16 %v41
    %v554 = vunpack.c.l.b16 %v42
    %v555 = vunpack.c.l.b16 %v43
    %v556 = vunpack.c.l.b16 %v44
    %v557 = vunpack.c.l.b16 %v45
    %v558 = vunpack.c.l.b16 %v46
    %v559 = vunpack.c.l.b16 %v47
    %v560 = vunpack.c.l.b16 %v48
    %v561 = vunpack.c.l.b16 %v49
    %v562 = vunpack.c.l.b16 %v50
    %v563 = vunpack.c.l.b16 %v51
    %v564 = vunpack.c.l.b16 %v52
    %v565 = vunpack.c.l.b16 %v53
    %v566 = vunpack.c.l.b16 %v54
    %v567 = vunpack.c.l.b16 %v55
    %v568 = vunpack.c.l.b16 %v56
    %v569 = vunpack.c.l.b16 %v57
    %v570 = vunpack.c.l.b16 %v58
    %v571 = vunpack.c.l.b16 %v59
    %v572 = vunpack.c.l.b16 %v60
    %v573 = vunpack.c.l.b16 %v61
    %v574 = vunpack.c.l.b16 %v62
    %v575 = vunpack.c.l.b16 %v63
    %v576 = vunpack.c.l.b16 %v64
    %v577 = vunpack.c.l.b16 %v65
    %v578 = vunpack.c.l.b16 %v66
    %v579 = vunpack.c.l.b16 %v67
    %v580 = vunpack.c.l.b16 %v68
    %v581 = vunpack.c.l.b16 %v69
    %v582 = vunpack.c.l.b16 %v70
    %v583 = vunpack.c.l.b16 %v71
    %v584 = vunpack.c.l.b16 %v72
    %v585 = vunpack.c.l.b16 %v73
    %v586 = vunpack.c.l.b16 %v74
    %v587 = vunpack.c.l.b16 %v75
    %v588 = vunpack.c.l.b16 %v76
    %v589 = vunpack.c.l.b16 %v77
    %v590 = vunpack.c.l.b16 %v78
    %v591 = vunpack.c.l.b16 %v79
    %v592 = vunpack.c.l.b16 %v80
    %v593 = vunpack.c.l.b16 %v81
    %v594 = vunpack.c.l.b16 %v82
    %v595 = vunpack.c.l.b16 %v83
    %v596 = vunpack.c.l.b16 %v84
    %v597 = vunpack.c.l.b16 %v85
    %v598 = vunpack.c.l.b16 %v86
    %v599 = vunpack.c.l.b16 %v87
    %v600 = vunpack.c.l.b16 %v88
    %v601 = vunpack.c.l.b16 %v89
    %v602 = vunpack.c.l.b16 %v90
    %v603 = vunpack.c.l.b16 %v91
    %v604 = vunpack.c.l.b16 %v92
    %v605 = vunpack.c.l.b16 %v93
    %v606 = vunpack.c.l.b16 %v94
    %v607 = vunpack.c.l.b16 %v95
    %v608 = vunpack.c.l.b16 %v96
    %v609 = vunpack.c.l.b16 %v97
    %v610 = vunpack.c.l.b16 %v98
    %v611 = vunpack.c.l.b16 %v99
    %v612 = vunpack.c.l.b16 %v100
    %v613 = vunpack.c.l.b16 %v101
    %v614 = vunpack.c.l.b16 %v102
    %v615 = vunpack.c.l.b16 %v103
    %v616 = vpack.c.b16 %v553, %v552
    %v617 = vpack.c.b16 %v555, %v554
    %v618 = vpack.c.b16 %v557, %v556
    %v619 = vpack.c.b16 %v559, %v558
    %v620 = vpack.c.b16 %v561, %v560
    %v621 = vpack.c.b16 %v563, %v562
    %v622 = vpack.c.b16 %v565, %v564
    %v623 = vpack.c.b16 %v567, %v566
    %v624 = vpack.c.b16 %v569, %v568
    %v625 = vpack.c.b16 %v571, %v570
    %v626 = vpack.c.b16 %v573, %v572
    %v627 = vpack.c.b16 %v575, %v574
    %v628 = vpack.c.b16 %v577, %v576
    %v629 = vpack.c.b16 %v579, %v578
    %v630 = vpack.c.b16 %v581, %v580
    %v631 = vpack.c.b16 %v583, %v582
    %v632 = vpack.c.b16 %v585, %v584
    %v633 = vpack.c.b16 %v587, %v586
    %v634 = vpack.c.b16 %v589, %v588
    %v635 = vpack.c.b16 %v591, %v590
    %v636 = vpack.c.b16 %v593, %v592
    %v637 = vpack.c.b16 %v595, %v594
    %v638 = vpack.c.b16 %v597, %v596
    %v639 = vpack.c.b16 %v599, %v598
    %v640 = vpack.c.b16 %v601, %v600
    %v641 = vpack.c.b16 %v603, %v602
    %v642 = vpack.c.b16 %v605, %v604
    %v643 = vpack.c.b16 %v607, %v606
    %v644 = vpack.c.b16 %v609, %v608
    %v645 = vpack.c.b16 %v611, %v610
    %v646 = vpack.c.b16 %v613, %v612
    %v647 = vpack.c.b16 %v615, %v614
    %vm648 = vcmask 261120
    %v650 = vsel %vm648, %v616, 0
    %v653 = vsel %vm648, %v617, 0
    %v656 = vsel %vm648, %v618, 0
    %v659 = vsel %vm648, %v619, 0
    %v662 = vsel %vm648, %v620, 0
    %v665 = vsel %vm648, %v621, 0
    %v668 = vsel %vm648, %v622, 0
    %v671 = vsel %vm648, %v623, 0
    %v674 = vsel %vm648, %v624, 0
    %v677 = vsel %vm648, %v625, 0
    %v680 = vsel %vm648, %v626, 0
    %v683 = vsel %vm648, %v627, 0
    %v686 = vsel %vm648, %v628, 0
    %v689 = vsel %vm648, %v629, 0
    %v692 = vsel %vm648, %v630, 0
    %v695 = vsel %vm648, %v631, 0
    %v698 = vsel %vm648, %v632, 0
    %v701 = vsel %vm648, %v633, 0
    %v704 = vsel %vm648, %v634, 0
    %v707 = vsel %vm648, %v635, 0
    %v710 = vsel %vm648, %v636, 0
    %v713 = vsel %vm648, %v637, 0
    %v716 = vsel %vm648, %v638, 0
    %v719 = vsel %vm648, %v639, 0
    %v722 = vsel %vm648, %v640, 0
    %v725 = vsel %vm648, %v641, 0
    %v728 = vsel %vm648, %v642, 0
    %v731 = vsel %vm648, %v643, 0
    %v734 = vsel %vm648, %v644, 0
    %v737 = vsel %vm648, %v645, 0
    %v740 = vsel %vm648, %v646, 0
    %v743 = vsel %vm648, %v647, 0
    %745 = vmatpush.bf16.msra.mxu0 0
    %746 = vmatpush.bf16.msra.mxu0 0
    %747 = vmatpush.bf16.msra.mxu0 0
    %748 = vmatpush.bf16.msra.mxu0 0
    %749 = vmatpush.bf16.msra.mxu0 0
    %750 = vmatpush.bf16.msra.mxu0 0
    %751 = vmatpush.bf16.msra.mxu0 %v39
    %752 = vmatpush.bf16.msra.mxu0 %v38
    %753 = vmatmul.bf16.gmra.mxu0 %v650
    %v754 = vpop.f32.mrf.mxu0
    %v755 = vadd.f32 %v171, %v754
    %v756 = vpop.f32.mrf.mxu0
    %v757 = vadd.f32 %v176, %v756
    %758 = vmatmul.bf16.gmra.mxu0 %v653
    %v759 = vpop.f32.mrf.mxu0
    %v760 = vadd.f32 %v181, %v759
    %v761 = vpop.f32.mrf.mxu0
    %v762 = vadd.f32 %v186, %v761
    %763 = vmatmul.bf16.gmra.mxu0 %v656
    %v764 = vpop.f32.mrf.mxu0
    %v765 = vadd.f32 %v191, %v764
    %v766 = vpop.f32.mrf.mxu0
    %v767 = vadd.f32 %v196, %v766
    %768 = vmatmul.bf16.gmra.mxu0 %v659
    %v769 = vpop.f32.mrf.mxu0
    %v770 = vadd.f32 %v201, %v769
    %v771 = vpop.f32.mrf.mxu0
    %v772 = vadd.f32 %v206, %v771
    %773 = vmatmul.bf16.gmra.mxu0 %v662
    %v774 = vpop.f32.mrf.mxu0
    %v775 = vadd.f32 %v211, %v774
    %v776 = vpop.f32.mrf.mxu0
    %v777 = vadd.f32 %v216, %v776
    %778 = vmatmul.bf16.gmra.mxu0 %v665
    %v779 = vpop.f32.mrf.mxu0
    %v780 = vadd.f32 %v221, %v779
    %v781 = vpop.f32.mrf.mxu0
    %v782 = vadd.f32 %v226, %v781
    %783 = vmatmul.bf16.gmra.mxu0 %v668
    %v784 = vpop.f32.mrf.mxu0
    %v785 = vadd.f32 %v231, %v784
    %v786 = vpop.f32.mrf.mxu0
    %v787 = vadd.f32 %v236, %v786
    %788 = vmatmul.bf16.gmra.mxu0 %v671
    %v789 = vpop.f32.mrf.mxu0
    %v790 = vadd.f32 %v241, %v789
    %v791 = vpop.f32.mrf.mxu0
    %v792 = vadd.f32 %v246, %v791
    %793 = vmatmul.bf16.gmra.mxu0 %v674
    %v794 = vpop.f32.mrf.mxu0
    %v795 = vadd.f32 %v251, %v794
    %v796 = vpop.f32.mrf.mxu0
    %v797 = vadd.f32 %v256, %v796
    %798 = vmatmul.bf16.gmra.mxu0 %v677
    %v799 = vpop.f32.mrf.mxu0
    %v800 = vadd.f32 %v261, %v799
    %v801 = vpop.f32.mrf.mxu0
    %v802 = vadd.f32 %v266, %v801
    %803 = vmatmul.bf16.gmra.mxu0 %v680
    %v804 = vpop.f32.mrf.mxu0
    %v805 = vadd.f32 %v271, %v804
    %v806 = vpop.f32.mrf.mxu0
    %v807 = vadd.f32 %v276, %v806
    %808 = vmatmul.bf16.gmra.mxu0 %v683
    %v809 = vpop.f32.mrf.mxu0
    %v810 = vadd.f32 %v281, %v809
    %v811 = vpop.f32.mrf.mxu0
    %v812 = vadd.f32 %v286, %v811
    %813 = vmatmul.bf16.gmra.mxu0 %v686
    %v814 = vpop.f32.mrf.mxu0
    %v815 = vadd.f32 %v291, %v814
    %v816 = vpop.f32.mrf.mxu0
    %v817 = vadd.f32 %v296, %v816
    %818 = vmatmul.bf16.gmra.mxu0 %v689
    %v819 = vpop.f32.mrf.mxu0
    %v820 = vadd.f32 %v301, %v819
    %v821 = vpop.f32.mrf.mxu0
    %v822 = vadd.f32 %v306, %v821
    %823 = vmatmul.bf16.gmra.mxu0 %v692
    %v824 = vpop.f32.mrf.mxu0
    %v825 = vadd.f32 %v311, %v824
    %v826 = vpop.f32.mrf.mxu0
    %v827 = vadd.f32 %v316, %v826
    %828 = vmatmul.bf16.gmra.mxu0 %v695
    %v829 = vpop.f32.mrf.mxu0
    %v830 = vadd.f32 %v321, %v829
    %v831 = vpop.f32.mrf.mxu0
    %v832 = vadd.f32 %v326, %v831
    %833 = vmatmul.bf16.gmra.mxu0 %v698
    %v834 = vpop.f32.mrf.mxu0
    %v835 = vadd.f32 %v331, %v834
    %v836 = vpop.f32.mrf.mxu0
    %v837 = vadd.f32 %v336, %v836
    %838 = vmatmul.bf16.gmra.mxu0 %v701
    %v839 = vpop.f32.mrf.mxu0
    %v840 = vadd.f32 %v341, %v839
    %v841 = vpop.f32.mrf.mxu0
    %v842 = vadd.f32 %v346, %v841
    %843 = vmatmul.bf16.gmra.mxu0 %v704
    %v844 = vpop.f32.mrf.mxu0
    %v845 = vadd.f32 %v351, %v844
    %v846 = vpop.f32.mrf.mxu0
    %v847 = vadd.f32 %v356, %v846
    %848 = vmatmul.bf16.gmra.mxu0 %v707
    %v849 = vpop.f32.mrf.mxu0
    %v850 = vadd.f32 %v361, %v849
    %v851 = vpop.f32.mrf.mxu0
    %v852 = vadd.f32 %v366, %v851
    %853 = vmatmul.bf16.gmra.mxu0 %v710
    %v854 = vpop.f32.mrf.mxu0
    %v855 = vadd.f32 %v371, %v854
    %v856 = vpop.f32.mrf.mxu0
    %v857 = vadd.f32 %v376, %v856
    %858 = vmatmul.bf16.gmra.mxu0 %v713
    %v859 = vpop.f32.mrf.mxu0
    %v860 = vadd.f32 %v381, %v859
    %v861 = vpop.f32.mrf.mxu0
    %v862 = vadd.f32 %v386, %v861
    %863 = vmatmul.bf16.gmra.mxu0 %v716
    %v864 = vpop.f32.mrf.mxu0
    %v865 = vadd.f32 %v391, %v864
    %v866 = vpop.f32.mrf.mxu0
    %v867 = vadd.f32 %v396, %v866
    %868 = vmatmul.bf16.gmra.mxu0 %v719
    %v869 = vpop.f32.mrf.mxu0
    %v870 = vadd.f32 %v401, %v869
    %v871 = vpop.f32.mrf.mxu0
    %v872 = vadd.f32 %v406, %v871
    %873 = vmatmul.bf16.gmra.mxu0 %v722
    %v874 = vpop.f32.mrf.mxu0
    %v875 = vadd.f32 %v411, %v874
    %v876 = vpop.f32.mrf.mxu0
    %v877 = vadd.f32 %v416, %v876
    %878 = vmatmul.bf16.gmra.mxu0 %v725
    %v879 = vpop.f32.mrf.mxu0
    %v880 = vadd.f32 %v421, %v879
    %v881 = vpop.f32.mrf.mxu0
    %v882 = vadd.f32 %v426, %v881
    %883 = vmatmul.bf16.gmra.mxu0 %v728
    %v884 = vpop.f32.mrf.mxu0
    %v885 = vadd.f32 %v431, %v884
    %v886 = vpop.f32.mrf.mxu0
    %v887 = vadd.f32 %v436, %v886
    %888 = vmatmul.bf16.gmra.mxu0 %v731
    %v889 = vpop.f32.mrf.mxu0
    %v890 = vadd.f32 %v441, %v889
    %v891 = vpop.f32.mrf.mxu0
    %v892 = vadd.f32 %v446, %v891
    %893 = vmatmul.bf16.gmra.mxu0 %v734
    %v894 = vpop.f32.mrf.mxu0
    %v895 = vadd.f32 %v451, %v894
    %v896 = vpop.f32.mrf.mxu0
    %v897 = vadd.f32 %v456, %v896
    %898 = vmatmul.bf16.gmra.mxu0 %v737
    %v899 = vpop.f32.mrf.mxu0
    %v900 = vadd.f32 %v461, %v899
    %v901 = vpop.f32.mrf.mxu0
    %v902 = vadd.f32 %v466, %v901
    %903 = vmatmul.bf16.gmra.mxu0 %v740
    %v904 = vpop.f32.mrf.mxu0
    %v905 = vadd.f32 %v471, %v904
    %v906 = vpop.f32.mrf.mxu0
    %v907 = vadd.f32 %v476, %v906
    %908 = vmatmul.bf16.gmra.mxu0 %v743
    %v909 = vpop.f32.mrf.mxu0
    %v910 = vadd.f32 %v481, %v909
    %v911 = vpop.f32.mrf.mxu0
    %v912 = vadd.f32 %v486, %v911
    %913 = vdwg.mxu0
    %v914 = vmax.f32 %v755, 0.0
    %v915 = vmax.f32 %v757, 0.0
    %v916 = vmax.f32 %v760, 0.0
    %v917 = vmax.f32 %v762, 0.0
    %v918 = vmax.f32 %v765, 0.0
    %v919 = vmax.f32 %v767, 0.0
    %v920 = vmax.f32 %v770, 0.0
    %v921 = vmax.f32 %v772, 0.0
    %v922 = vmax.f32 %v775, 0.0
    %v923 = vmax.f32 %v777, 0.0
    %v924 = vmax.f32 %v780, 0.0
    %v925 = vmax.f32 %v782, 0.0
    %v926 = vmax.f32 %v785, 0.0
    %v927 = vmax.f32 %v787, 0.0
    %v928 = vmax.f32 %v790, 0.0
    %v929 = vmax.f32 %v792, 0.0
    %v930 = vmax.f32 %v795, 0.0
    %v931 = vmax.f32 %v797, 0.0
    %v932 = vmax.f32 %v800, 0.0
    %v933 = vmax.f32 %v802, 0.0
    %v934 = vmax.f32 %v805, 0.0
    %v935 = vmax.f32 %v807, 0.0
    %v936 = vmax.f32 %v810, 0.0
    %v937 = vmax.f32 %v812, 0.0
    %v938 = vmax.f32 %v815, 0.0
    %v939 = vmax.f32 %v817, 0.0
    %v940 = vmax.f32 %v820, 0.0
    %v941 = vmax.f32 %v822, 0.0
    %v942 = vmax.f32 %v825, 0.0
    %v943 = vmax.f32 %v827, 0.0
    %v944 = vmax.f32 %v830, 0.0
    %v945 = vmax.f32 %v832, 0.0
    %v946 = vmax.f32 %v835, 0.0
    %v947 = vmax.f32 %v837, 0.0
    %v948 = vmax.f32 %v840, 0.0
    %v949 = vmax.f32 %v842, 0.0
    %v950 = vmax.f32 %v845, 0.0
    %v951 = vmax.f32 %v847, 0.0
    %v952 = vmax.f32 %v850, 0.0
    %v953 = vmax.f32 %v852, 0.0
    %v954 = vmax.f32 %v855, 0.0
    %v955 = vmax.f32 %v857, 0.0
    %v956 = vmax.f32 %v860, 0.0
    %v957 = vmax.f32 %v862, 0.0
    %v958 = vmax.f32 %v865, 0.0
    %v959 = vmax.f32 %v867, 0.0
    %v960 = vmax.f32 %v870, 0.0
    %v961 = vmax.f32 %v872, 0.0
    %v962 = vmax.f32 %v875, 0.0
    %v963 = vmax.f32 %v877, 0.0
    %v964 = vmax.f32 %v880, 0.0
    %v965 = vmax.f32 %v882, 0.0
    %v966 = vmax.f32 %v885, 0.0
    %v967 = vmax.f32 %v887, 0.0
    %v968 = vmax.f32 %v890, 0.0
    %v969 = vmax.f32 %v892, 0.0
    %v970 = vmax.f32 %v895, 0.0
    %v971 = vmax.f32 %v897, 0.0
    %v972 = vmax.f32 %v900, 0.0
    %v973 = vmax.f32 %v902, 0.0
    %v974 = vmax.f32 %v905, 0.0
    %v975 = vmax.f32 %v907, 0.0
    %v976 = vmax.f32 %v910, 0.0
    %v977 = vmax.f32 %v912, 0.0
    %v978 = vpack.c.bf16 %v915, %v914
    %v979 = vpack.c.bf16 %v917, %v916
    %v980 = vpack.c.bf16 %v919, %v918
    %v981 = vpack.c.bf16 %v921, %v920
    %v982 = vpack.c.bf16 %v923, %v922
    %v983 = vpack.c.bf16 %v925, %v924
    %v984 = vpack.c.bf16 %v927, %v926
    %v985 = vpack.c.bf16 %v929, %v928
    %v986 = vpack.c.bf16 %v931, %v930
    %v987 = vpack.c.bf16 %v933, %v932
    %v988 = vpack.c.bf16 %v935, %v934
    %v989 = vpack.c.bf16 %v937, %v936
    %v990 = vpack.c.bf16 %v939, %v938
    %v991 = vpack.c.bf16 %v941, %v940
    %v992 = vpack.c.bf16 %v943, %v942
    %v993 = vpack.c.bf16 %v945, %v944
    %v994 = vpack.c.bf16 %v947, %v946
    %v995 = vpack.c.bf16 %v949, %v948
    %v996 = vpack.c.bf16 %v951, %v950
    %v997 = vpack.c.bf16 %v953, %v952
    %v998 = vpack.c.bf16 %v955, %v954
    %v999 = vpack.c.bf16 %v957, %v956
    %v1000 = vpack.c.bf16 %v959, %v958
    %v1001 = vpack.c.bf16 %v961, %v960
    %v1002 = vpack.c.bf16 %v963, %v962
    %v1003 = vpack.c.bf16 %v965, %v964
    %v1004 = vpack.c.bf16 %v967, %v966
    %v1005 = vpack.c.bf16 %v969, %v968
    %v1006 = vpack.c.bf16 %v971, %v970
    %v1007 = vpack.c.bf16 %v973, %v972
    %v1008 = vpack.c.bf16 %v975, %v974
    %v1009 = vpack.c.bf16 %v977, %v976
    %v1010 = vld [vmem:[%s2] sm:$0xff]
    %v1011 = vld [vmem:[%s2 + $0x8] sm:$0xff]
    %v1012 = vld [vmem:[%s2 + $0x10] sm:$0xff]
    %v1013 = vld [vmem:[%s2 + $0x18] sm:$0xff]
    %v1014 = vld [vmem:[%s2 + $0x20] sm:$0xff]
    %v1015 = vld [vmem:[%s2 + $0x28] sm:$0xff]
    %v1016 = vld [vmem:[%s2 + $0x30] sm:$0xff]
    %v1017 = vld [vmem:[%s2 + $0x38] sm:$0xff]
    %v1018 = vld [vmem:[%s2 + $0x40] sm:$0xff]
    %v1019 = vld [vmem:[%s2 + $0x48] sm:$0xff]
    %v1020 = vld [vmem:[%s2 + $0x50] sm:$0xff]
    %v1021 = vld [vmem:[%s2 + $0x58] sm:$0xff]
    %v1022 = vld [vmem:[%s2 + $0x60] sm:$0xff]
    %v1023 = vld [vmem:[%s2 + $0x68] sm:$0xff]
    %v1024 = vld [vmem:[%s2 + $0x70] sm:$0xff]
    %v1025 = vld [vmem:[%s2 + $0x78] sm:$0xff]
    %v1026 = vld [vmem:[%s2 + $0x80] sm:$0xff]
    %v1027 = vld [vmem:[%s2 + $0x88] sm:$0xff]
    %v1028 = vld [vmem:[%s2 + $0x90] sm:$0xff]
    %v1029 = vld [vmem:[%s2 + $0x98] sm:$0xff]
    %v1030 = vld [vmem:[%s2 + $0xa0] sm:$0xff]
    %v1031 = vld [vmem:[%s2 + $0xa8] sm:$0xff]
    %v1032 = vld [vmem:[%s2 + $0xb0] sm:$0xff]
    %v1033 = vld [vmem:[%s2 + $0xb8] sm:$0xff]
    %v1034 = vld [vmem:[%s2 + $0xc0] sm:$0xff]
    %v1035 = vld [vmem:[%s2 + $0xc8] sm:$0xff]
    %v1036 = vld [vmem:[%s2 + $0xd0] sm:$0xff]
    %v1037 = vld [vmem:[%s2 + $0xd8] sm:$0xff]
    %v1038 = vld [vmem:[%s2 + $0xe0] sm:$0xff]
    %v1039 = vld [vmem:[%s2 + $0xe8] sm:$0xff]
    %v1040 = vld [vmem:[%s2 + $0xf0] sm:$0xff]
    %v1041 = vld [vmem:[%s2 + $0xf8] sm:$0xff]
    %v1042 = vld [vmem:[%s2 + $0x100] sm:$0xff]
    %v1043 = vld [vmem:[%s2 + $0x108] sm:$0xff]
    %v1044 = vld [vmem:[%s2 + $0x110] sm:$0xff]
    %v1045 = vld [vmem:[%s2 + $0x118] sm:$0xff]
    %v1046 = vld [vmem:[%s2 + $0x120] sm:$0xff]
    %v1047 = vld [vmem:[%s2 + $0x128] sm:$0xff]
    %v1048 = vld [vmem:[%s2 + $0x130] sm:$0xff]
    %v1049 = vld [vmem:[%s2 + $0x138] sm:$0xff]
    %v1050 = vld [vmem:[%s2 + $0x140] sm:$0xff]
    %v1051 = vld [vmem:[%s2 + $0x148] sm:$0xff]
    %v1052 = vld [vmem:[%s2 + $0x150] sm:$0xff]
    %v1053 = vld [vmem:[%s2 + $0x158] sm:$0xff]
    %v1054 = vld [vmem:[%s2 + $0x160] sm:$0xff]
    %v1055 = vld [vmem:[%s2 + $0x168] sm:$0xff]
    %v1056 = vld [vmem:[%s2 + $0x170] sm:$0xff]
    %v1057 = vld [vmem:[%s2 + $0x178] sm:$0xff]
    %v1058 = vld [vmem:[%s2 + $0x180] sm:$0xff]
    %v1059 = vld [vmem:[%s2 + $0x188] sm:$0xff]
    %v1060 = vld [vmem:[%s2 + $0x190] sm:$0xff]
    %v1061 = vld [vmem:[%s2 + $0x198] sm:$0xff]
    %v1062 = vld [vmem:[%s2 + $0x1a0] sm:$0xff]
    %v1063 = vld [vmem:[%s2 + $0x1a8] sm:$0xff]
    %v1064 = vld [vmem:[%s2 + $0x1b0] sm:$0xff]
    %v1065 = vld [vmem:[%s2 + $0x1b8] sm:$0xff]
    %v1066 = vld [vmem:[%s2 + $0x1c0] sm:$0xff]
    %v1067 = vld [vmem:[%s2 + $0x1c8] sm:$0xff]
    %v1068 = vld [vmem:[%s2 + $0x1d0] sm:$0xff]
    %v1069 = vld [vmem:[%s2 + $0x1d8] sm:$0xff]
    %v1070 = vld [vmem:[%s2 + $0x1e0] sm:$0xff]
    %v1071 = vld [vmem:[%s2 + $0x1e8] sm:$0xff]
    %v1072 = vld [vmem:[%s2 + $0x1f0] sm:$0xff]
    %v1073 = vld [vmem:[%s2 + $0x1f8] sm:$0xff]
    %v1074 = vld [vmem:[%s8] sm:$0xff]
    %v1075 = vld [vmem:[%s8 + $0x8] sm:$0xff]
    %v1076 = vld [vmem:[%s8 + $0x10] sm:$0xff]
    %v1077 = vld [vmem:[%s8 + $0x18] sm:$0xff]
    %v1078 = vld [vmem:[%s8 + $0x20] sm:$0xff]
    %v1079 = vld [vmem:[%s8 + $0x28] sm:$0xff]
    %v1080 = vld [vmem:[%s8 + $0x30] sm:$0xff]
    %v1081 = vld [vmem:[%s8 + $0x38] sm:$0xff]
    %v1082 = vld [vmem:[%s8 + $0x40] sm:$0xff]
    %v1083 = vld [vmem:[%s8 + $0x48] sm:$0xff]
    %v1084 = vld [vmem:[%s8 + $0x50] sm:$0xff]
    %v1085 = vld [vmem:[%s8 + $0x58] sm:$0xff]
    %v1086 = vld [vmem:[%s8 + $0x60] sm:$0xff]
    %v1087 = vld [vmem:[%s8 + $0x68] sm:$0xff]
    %v1088 = vld [vmem:[%s8 + $0x70] sm:$0xff]
    %v1089 = vld [vmem:[%s8 + $0x78] sm:$0xff]
    %v1090 = vld [vmem:[%s8 + $0x80] sm:$0xff]
    %v1091 = vld [vmem:[%s8 + $0x88] sm:$0xff]
    %v1092 = vld [vmem:[%s8 + $0x90] sm:$0xff]
    %v1093 = vld [vmem:[%s8 + $0x98] sm:$0xff]
    %v1094 = vld [vmem:[%s8 + $0xa0] sm:$0xff]
    %v1095 = vld [vmem:[%s8 + $0xa8] sm:$0xff]
    %v1096 = vld [vmem:[%s8 + $0xb0] sm:$0xff]
    %v1097 = vld [vmem:[%s8 + $0xb8] sm:$0xff]
    %v1098 = vld [vmem:[%s8 + $0xc0] sm:$0xff]
    %v1099 = vld [vmem:[%s8 + $0xc8] sm:$0xff]
    %v1100 = vld [vmem:[%s8 + $0xd0] sm:$0xff]
    %v1101 = vld [vmem:[%s8 + $0xd8] sm:$0xff]
    %v1102 = vld [vmem:[%s8 + $0xe0] sm:$0xff]
    %v1103 = vld [vmem:[%s8 + $0xe8] sm:$0xff]
    %v1104 = vld [vmem:[%s8 + $0xf0] sm:$0xff]
    %v1105 = vld [vmem:[%s8 + $0xf8] sm:$0xff]
    %1107 = vset.pattern.permute.xlu0 1
    %1108 = vperm.xlu0 %1107, %v1074
    %v1109 = vpop.permute.xlu0 %1108
    %1112 = vset.pattern.permute.xlu0 1
    %1113 = vperm.xlu0 %1112, %v1075
    %v1114 = vpop.permute.xlu0 %1113
    %1117 = vset.pattern.permute.xlu0 1
    %1118 = vperm.xlu0 %1117, %v1076
    %v1119 = vpop.permute.xlu0 %1118
    %1122 = vset.pattern.permute.xlu0 1
    %1123 = vperm.xlu0 %1122, %v1077
    %v1124 = vpop.permute.xlu0 %1123
    %1127 = vset.pattern.permute.xlu0 1
    %1128 = vperm.xlu0 %1127, %v1078
    %v1129 = vpop.permute.xlu0 %1128
    %1132 = vset.pattern.permute.xlu0 1
    %1133 = vperm.xlu0 %1132, %v1079
    %v1134 = vpop.permute.xlu0 %1133
    %1137 = vset.pattern.permute.xlu0 1
    %1138 = vperm.xlu0 %1137, %v1080
    %v1139 = vpop.permute.xlu0 %1138
    %1142 = vset.pattern.permute.xlu0 1
    %1143 = vperm.xlu0 %1142, %v1081
    %v1144 = vpop.permute.xlu0 %1143
    %1147 = vset.pattern.permute.xlu0 1
    %1148 = vperm.xlu0 %1147, %v1082
    %v1149 = vpop.permute.xlu0 %1148
    %1152 = vset.pattern.permute.xlu0 1
    %1153 = vperm.xlu0 %1152, %v1083
    %v1154 = vpop.permute.xlu0 %1153
    %1157 = vset.pattern.permute.xlu0 1
    %1158 = vperm.xlu0 %1157, %v1084
    %v1159 = vpop.permute.xlu0 %1158
    %1162 = vset.pattern.permute.xlu0 1
    %1163 = vperm.xlu0 %1162, %v1085
    %v1164 = vpop.permute.xlu0 %1163
    %1167 = vset.pattern.permute.xlu0 1
    %1168 = vperm.xlu0 %1167, %v1086
    %v1169 = vpop.permute.xlu0 %1168
    %1172 = vset.pattern.permute.xlu0 1
    %1173 = vperm.xlu0 %1172, %v1087
    %v1174 = vpop.permute.xlu0 %1173
    %1177 = vset.pattern.permute.xlu0 1
    %1178 = vperm.xlu0 %1177, %v1088
    %v1179 = vpop.permute.xlu0 %1178
    %1182 = vset.pattern.permute.xlu0 1
    %1183 = vperm.xlu0 %1182, %v1089
    %v1184 = vpop.permute.xlu0 %1183
    %1187 = vset.pattern.permute.xlu0 1
    %1188 = vperm.xlu0 %1187, %v1090
    %v1189 = vpop.permute.xlu0 %1188
    %1192 = vset.pattern.permute.xlu0 1
    %1193 = vperm.xlu0 %1192, %v1091
    %v1194 = vpop.permute.xlu0 %1193
    %1197 = vset.pattern.permute.xlu0 1
    %1198 = vperm.xlu0 %1197, %v1092
    %v1199 = vpop.permute.xlu0 %1198
    %1202 = vset.pattern.permute.xlu0 1
    %1203 = vperm.xlu0 %1202, %v1093
    %v1204 = vpop.permute.xlu0 %1203
    %1207 = vset.pattern.permute.xlu0 1
    %1208 = vperm.xlu0 %1207, %v1094
    %v1209 = vpop.permute.xlu0 %1208
    %1212 = vset.pattern.permute.xlu0 1
    %1213 = vperm.xlu0 %1212, %v1095
    %v1214 = vpop.permute.xlu0 %1213
    %1217 = vset.pattern.permute.xlu0 1
    %1218 = vperm.xlu0 %1217, %v1096
    %v1219 = vpop.permute.xlu0 %1218
    %1222 = vset.pattern.permute.xlu0 1
    %1223 = vperm.xlu0 %1222, %v1097
    %v1224 = vpop.permute.xlu0 %1223
    %1227 = vset.pattern.permute.xlu0 1
    %1228 = vperm.xlu0 %1227, %v1098
    %v1229 = vpop.permute.xlu0 %1228
    %1232 = vset.pattern.permute.xlu0 1
    %1233 = vperm.xlu0 %1232, %v1099
    %v1234 = vpop.permute.xlu0 %1233
    %1237 = vset.pattern.permute.xlu0 1
    %1238 = vperm.xlu0 %1237, %v1100
    %v1239 = vpop.permute.xlu0 %1238
    %1242 = vset.pattern.permute.xlu0 1
    %1243 = vperm.xlu0 %1242, %v1101
    %v1244 = vpop.permute.xlu0 %1243
    %1247 = vset.pattern.permute.xlu0 1
    %1248 = vperm.xlu0 %1247, %v1102
    %v1249 = vpop.permute.xlu0 %1248
    %1252 = vset.pattern.permute.xlu0 1
    %1253 = vperm.xlu0 %1252, %v1103
    %v1254 = vpop.permute.xlu0 %1253
    %1257 = vset.pattern.permute.xlu0 1
    %1258 = vperm.xlu0 %1257, %v1104
    %v1259 = vpop.permute.xlu0 %1258
    %1262 = vset.pattern.permute.xlu0 1
    %1263 = vperm.xlu0 %1262, %v1105
    %v1264 = vpop.permute.xlu0 %1263
    %v1330 = vunpack.c.l.b16 %v1010
    %v1331 = vunpack.c.h.b16 %v1010
    %v1332 = vunpack.c.l.b16 %v1011
    %v1333 = vunpack.c.h.b16 %v1011
    %v1334 = vunpack.c.l.b16 %v1012
    %v1335 = vunpack.c.h.b16 %v1012
    %v1336 = vunpack.c.l.b16 %v1013
    %v1337 = vunpack.c.h.b16 %v1013
    %v1338 = vunpack.c.l.b16 %v1014
    %v1339 = vunpack.c.h.b16 %v1014
    %v1340 = vunpack.c.l.b16 %v1015
    %v1341 = vunpack.c.h.b16 %v1015
    %v1342 = vunpack.c.l.b16 %v1016
    %v1343 = vunpack.c.h.b16 %v1016
    %v1344 = vunpack.c.l.b16 %v1017
    %v1345 = vunpack.c.h.b16 %v1017
    %v1346 = vunpack.c.l.b16 %v1018
    %v1347 = vunpack.c.h.b16 %v1018
    %v1348 = vunpack.c.l.b16 %v1019
    %v1349 = vunpack.c.h.b16 %v1019
    %v1350 = vunpack.c.l.b16 %v1020
    %v1351 = vunpack.c.h.b16 %v1020
    %v1352 = vunpack.c.l.b16 %v1021
    %v1353 = vunpack.c.h.b16 %v1021
    %v1354 = vunpack.c.l.b16 %v1022
    %v1355 = vunpack.c.h.b16 %v1022
    %v1356 = vunpack.c.l.b16 %v1023
    %v1357 = vunpack.c.h.b16 %v1023
    %v1358 = vunpack.c.l.b16 %v1024
    %v1359 = vunpack.c.h.b16 %v1024
    %v1360 = vunpack.c.l.b16 %v1025
    %v1361 = vunpack.c.h.b16 %v1025
    %v1362 = vunpack.c.l.b16 %v1026
    %v1363 = vunpack.c.h.b16 %v1026
    %v1364 = vunpack.c.l.b16 %v1027
    %v1365 = vunpack.c.h.b16 %v1027
    %v1366 = vunpack.c.l.b16 %v1028
    %v1367 = vunpack.c.h.b16 %v1028
    %v1368 = vunpack.c.l.b16 %v1029
    %v1369 = vunpack.c.h.b16 %v1029
    %v1370 = vunpack.c.l.b16 %v1030
    %v1371 = vunpack.c.h.b16 %v1030
    %v1372 = vunpack.c.l.b16 %v1031
    %v1373 = vunpack.c.h.b16 %v1031
    %v1374 = vunpack.c.l.b16 %v1032
    %v1375 = vunpack.c.h.b16 %v1032
    %v1376 = vunpack.c.l.b16 %v1033
    %v1377 = vunpack.c.h.b16 %v1033
    %v1378 = vunpack.c.l.b16 %v1034
    %v1379 = vunpack.c.h.b16 %v1034
    %v1380 = vunpack.c.l.b16 %v1035
    %v1381 = vunpack.c.h.b16 %v1035
    %v1382 = vunpack.c.l.b16 %v1036
    %v1383 = vunpack.c.h.b16 %v1036
    %v1384 = vunpack.c.l.b16 %v1037
    %v1385 = vunpack.c.h.b16 %v1037
    %v1386 = vunpack.c.l.b16 %v1038
    %v1387 = vunpack.c.h.b16 %v1038
    %v1388 = vunpack.c.l.b16 %v1039
    %v1389 = vunpack.c.h.b16 %v1039
    %v1390 = vunpack.c.l.b16 %v1040
    %v1391 = vunpack.c.h.b16 %v1040
    %v1392 = vunpack.c.l.b16 %v1041
    %v1393 = vunpack.c.h.b16 %v1041
    %v1394 = vunpack.c.l.b16 %v1042
    %v1395 = vunpack.c.h.b16 %v1042
    %v1396 = vunpack.c.l.b16 %v1043
    %v1397 = vunpack.c.h.b16 %v1043
    %v1398 = vunpack.c.l.b16 %v1044
    %v1399 = vunpack.c.h.b16 %v1044
    %v1400 = vunpack.c.l.b16 %v1045
    %v1401 = vunpack.c.h.b16 %v1045
    %v1402 = vunpack.c.l.b16 %v1046
    %v1403 = vunpack.c.h.b16 %v1046
    %v1404 = vunpack.c.l.b16 %v1047
    %v1405 = vunpack.c.h.b16 %v1047
    %v1406 = vunpack.c.l.b16 %v1048
    %v1407 = vunpack.c.h.b16 %v1048
    %v1408 = vunpack.c.l.b16 %v1049
    %v1409 = vunpack.c.h.b16 %v1049
    %v1410 = vunpack.c.l.b16 %v1050
    %v1411 = vunpack.c.h.b16 %v1050
    %v1412 = vunpack.c.l.b16 %v1051
    %v1413 = vunpack.c.h.b16 %v1051
    %v1414 = vunpack.c.l.b16 %v1052
    %v1415 = vunpack.c.h.b16 %v1052
    %v1416 = vunpack.c.l.b16 %v1053
    %v1417 = vunpack.c.h.b16 %v1053
    %v1418 = vunpack.c.l.b16 %v1054
    %v1419 = vunpack.c.h.b16 %v1054
    %v1420 = vunpack.c.l.b16 %v1055
    %v1421 = vunpack.c.h.b16 %v1055
    %v1422 = vunpack.c.l.b16 %v1056
    %v1423 = vunpack.c.h.b16 %v1056
    %v1424 = vunpack.c.l.b16 %v1057
    %v1425 = vunpack.c.h.b16 %v1057
    %v1426 = vunpack.c.l.b16 %v1058
    %v1427 = vunpack.c.h.b16 %v1058
    %v1428 = vunpack.c.l.b16 %v1059
    %v1429 = vunpack.c.h.b16 %v1059
    %v1430 = vunpack.c.l.b16 %v1060
    %v1431 = vunpack.c.h.b16 %v1060
    %v1432 = vunpack.c.l.b16 %v1061
    %v1433 = vunpack.c.h.b16 %v1061
    %v1434 = vunpack.c.l.b16 %v1062
    %v1435 = vunpack.c.h.b16 %v1062
    %v1436 = vunpack.c.l.b16 %v1063
    %v1437 = vunpack.c.h.b16 %v1063
    %v1438 = vunpack.c.l.b16 %v1064
    %v1439 = vunpack.c.h.b16 %v1064
    %v1440 = vunpack.c.l.b16 %v1065
    %v1441 = vunpack.c.h.b16 %v1065
    %v1442 = vunpack.c.l.b16 %v1066
    %v1443 = vunpack.c.h.b16 %v1066
    %v1444 = vunpack.c.l.b16 %v1067
    %v1445 = vunpack.c.h.b16 %v1067
    %v1446 = vunpack.c.l.b16 %v1068
    %v1447 = vunpack.c.h.b16 %v1068
    %v1448 = vunpack.c.l.b16 %v1069
    %v1449 = vunpack.c.h.b16 %v1069
    %v1450 = vunpack.c.l.b16 %v1070
    %v1451 = vunpack.c.h.b16 %v1070
    %v1452 = vunpack.c.l.b16 %v1071
    %v1453 = vunpack.c.h.b16 %v1071
    %v1454 = vunpack.c.l.b16 %v1072
    %v1455 = vunpack.c.h.b16 %v1072
    %v1456 = vunpack.c.l.b16 %v1073
    %v1457 = vunpack.c.h.b16 %v1073
    %v1458 = vpack.c.b16 %v1334, %v1330
    %v1459 = vpack.c.b16 %v1335, %v1331
    %v1460 = vpack.c.b16 %v1336, %v1332
    %v1461 = vpack.c.b16 %v1337, %v1333
    %v1462 = vpack.c.b16 %v1342, %v1338
    %v1463 = vpack.c.b16 %v1343, %v1339
    %v1464 = vpack.c.b16 %v1344, %v1340
    %v1465 = vpack.c.b16 %v1345, %v1341
    %v1466 = vpack.c.b16 %v1350, %v1346
    %v1467 = vpack.c.b16 %v1351, %v1347
    %v1468 = vpack.c.b16 %v1352, %v1348
    %v1469 = vpack.c.b16 %v1353, %v1349
    %v1470 = vpack.c.b16 %v1358, %v1354
    %v1471 = vpack.c.b16 %v1359, %v1355
    %v1472 = vpack.c.b16 %v1360, %v1356
    %v1473 = vpack.c.b16 %v1361, %v1357
    %v1474 = vpack.c.b16 %v1366, %v1362
    %v1475 = vpack.c.b16 %v1367, %v1363
    %v1476 = vpack.c.b16 %v1368, %v1364
    %v1477 = vpack.c.b16 %v1369, %v1365
    %v1478 = vpack.c.b16 %v1374, %v1370
    %v1479 = vpack.c.b16 %v1375, %v1371
    %v1480 = vpack.c.b16 %v1376, %v1372
    %v1481 = vpack.c.b16 %v1377, %v1373
    %v1482 = vpack.c.b16 %v1382, %v1378
    %v1483 = vpack.c.b16 %v1383, %v1379
    %v1484 = vpack.c.b16 %v1384, %v1380
    %v1485 = vpack.c.b16 %v1385, %v1381
    %v1486 = vpack.c.b16 %v1390, %v1386
    %v1487 = vpack.c.b16 %v1391, %v1387
    %v1488 = vpack.c.b16 %v1392, %v1388
    %v1489 = vpack.c.b16 %v1393, %v1389
    %v1490 = vpack.c.b16 %v1398, %v1394
    %v1491 = vpack.c.b16 %v1399, %v1395
    %v1492 = vpack.c.b16 %v1400, %v1396
    %v1493 = vpack.c.b16 %v1401, %v1397
    %v1494 = vpack.c.b16 %v1406, %v1402
    %v1495 = vpack.c.b16 %v1407, %v1403
    %v1496 = vpack.c.b16 %v1408, %v1404
    %v1497 = vpack.c.b16 %v1409, %v1405
    %v1498 = vpack.c.b16 %v1414, %v1410
    %v1499 = vpack.c.b16 %v1415, %v1411
    %v1500 = vpack.c.b16 %v1416, %v1412
    %v1501 = vpack.c.b16 %v1417, %v1413
    %v1502 = vpack.c.b16 %v1422, %v1418
    %v1503 = vpack.c.b16 %v1423, %v1419
    %v1504 = vpack.c.b16 %v1424, %v1420
    %v1505 = vpack.c.b16 %v1425, %v1421
    %v1506 = vpack.c.b16 %v1430, %v1426
    %v1507 = vpack.c.b16 %v1431, %v1427
    %v1508 = vpack.c.b16 %v1432, %v1428
    %v1509 = vpack.c.b16 %v1433, %v1429
    %v1510 = vpack.c.b16 %v1438, %v1434
    %v1511 = vpack.c.b16 %v1439, %v1435
    %v1512 = vpack.c.b16 %v1440, %v1436
    %v1513 = vpack.c.b16 %v1441, %v1437
    %v1514 = vpack.c.b16 %v1446, %v1442
    %v1515 = vpack.c.b16 %v1447, %v1443
    %v1516 = vpack.c.b16 %v1448, %v1444
    %v1517 = vpack.c.b16 %v1449, %v1445
    %v1518 = vpack.c.b16 %v1454, %v1450
    %v1519 = vpack.c.b16 %v1455, %v1451
    %v1520 = vpack.c.b16 %v1456, %v1452
    %v1521 = vpack.c.b16 %v1457, %v1453
    %1586 = vmatpush.bf16.msra.mxu0 %v985
    %1587 = vmatpush.bf16.msra.mxu0 %v984
    %1588 = vmatpush.bf16.msra.mxu0 %v983
    %1589 = vmatpush.bf16.msra.mxu0 %v982
    %1590 = vmatpush.bf16.msra.mxu0 %v981
    %1591 = vmatpush.bf16.msra.mxu0 %v980
    %1592 = vmatpush.bf16.msra.mxu0 %v979
    %1593 = vmatpush.bf16.msra.mxu0 %v978
    %1594 = vmatmul.bf16.gmra.mxu0 %v1458
    %v1595 = vpop.f32.mrf.mxu0
    %v1596 = vadd.f32 %v1109, %v1595
    %v1597 = vpop.f32.mrf.mxu0
    %v1598 = vadd.f32 %v1114, %v1597
    %1599 = vmatmul.bf16.gmra.mxu0 %v1462
    %v1600 = vpop.f32.mrf.mxu0
    %v1601 = vadd.f32 %v1119, %v1600
    %v1602 = vpop.f32.mrf.mxu0
    %v1603 = vadd.f32 %v1124, %v1602
    %1604 = vmatmul.bf16.gmra.mxu0 %v1466
    %v1605 = vpop.f32.mrf.mxu0
    %v1606 = vadd.f32 %v1129, %v1605
    %v1607 = vpop.f32.mrf.mxu0
    %v1608 = vadd.f32 %v1134, %v1607
    %1609 = vmatmul.bf16.gmra.mxu0 %v1470
    %v1610 = vpop.f32.mrf.mxu0
    %v1611 = vadd.f32 %v1139, %v1610
    %v1612 = vpop.f32.mrf.mxu0
    %v1613 = vadd.f32 %v1144, %v1612
    %1614 = vmatmul.bf16.gmra.mxu0 %v1474
    %v1615 = vpop.f32.mrf.mxu0
    %v1616 = vadd.f32 %v1149, %v1615
    %v1617 = vpop.f32.mrf.mxu0
    %v1618 = vadd.f32 %v1154, %v1617
    %1619 = vmatmul.bf16.gmra.mxu0 %v1478
    %v1620 = vpop.f32.mrf.mxu0
    %v1621 = vadd.f32 %v1159, %v1620
    %v1622 = vpop.f32.mrf.mxu0
    %v1623 = vadd.f32 %v1164, %v1622
    %1624 = vmatmul.bf16.gmra.mxu0 %v1482
    %v1625 = vpop.f32.mrf.mxu0
    %v1626 = vadd.f32 %v1169, %v1625
    %v1627 = vpop.f32.mrf.mxu0
    %v1628 = vadd.f32 %v1174, %v1627
    %1629 = vmatmul.bf16.gmra.mxu0 %v1486
    %v1630 = vpop.f32.mrf.mxu0
    %v1631 = vadd.f32 %v1179, %v1630
    %v1632 = vpop.f32.mrf.mxu0
    %v1633 = vadd.f32 %v1184, %v1632
    %1634 = vmatmul.bf16.gmra.mxu0 %v1490
    %v1635 = vpop.f32.mrf.mxu0
    %v1636 = vadd.f32 %v1189, %v1635
    %v1637 = vpop.f32.mrf.mxu0
    %v1638 = vadd.f32 %v1194, %v1637
    %1639 = vmatmul.bf16.gmra.mxu0 %v1494
    %v1640 = vpop.f32.mrf.mxu0
    %v1641 = vadd.f32 %v1199, %v1640
    %v1642 = vpop.f32.mrf.mxu0
    %v1643 = vadd.f32 %v1204, %v1642
    %1644 = vmatmul.bf16.gmra.mxu0 %v1498
    %v1645 = vpop.f32.mrf.mxu0
    %v1646 = vadd.f32 %v1209, %v1645
    %v1647 = vpop.f32.mrf.mxu0
    %v1648 = vadd.f32 %v1214, %v1647
    %1649 = vmatmul.bf16.gmra.mxu0 %v1502
    %v1650 = vpop.f32.mrf.mxu0
    %v1651 = vadd.f32 %v1219, %v1650
    %v1652 = vpop.f32.mrf.mxu0
    %v1653 = vadd.f32 %v1224, %v1652
    %1654 = vmatmul.bf16.gmra.mxu0 %v1506
    %v1655 = vpop.f32.mrf.mxu0
    %v1656 = vadd.f32 %v1229, %v1655
    %v1657 = vpop.f32.mrf.mxu0
    %v1658 = vadd.f32 %v1234, %v1657
    %1659 = vmatmul.bf16.gmra.mxu0 %v1510
    %v1660 = vpop.f32.mrf.mxu0
    %v1661 = vadd.f32 %v1239, %v1660
    %v1662 = vpop.f32.mrf.mxu0
    %v1663 = vadd.f32 %v1244, %v1662
    %1664 = vmatmul.bf16.gmra.mxu0 %v1514
    %v1665 = vpop.f32.mrf.mxu0
    %v1666 = vadd.f32 %v1249, %v1665
    %v1667 = vpop.f32.mrf.mxu0
    %v1668 = vadd.f32 %v1254, %v1667
    %1669 = vmatmul.bf16.gmra.mxu0 %v1518
    %v1670 = vpop.f32.mrf.mxu0
    %v1671 = vadd.f32 %v1259, %v1670
    %v1672 = vpop.f32.mrf.mxu0
    %v1673 = vadd.f32 %v1264, %v1672
    %1674 = vdwg.mxu0
    %1675 = vmatpush.bf16.msra.mxu0 %v993
    %1676 = vmatpush.bf16.msra.mxu0 %v992
    %1677 = vmatpush.bf16.msra.mxu0 %v991
    %1678 = vmatpush.bf16.msra.mxu0 %v990
    %1679 = vmatpush.bf16.msra.mxu0 %v989
    %1680 = vmatpush.bf16.msra.mxu0 %v988
    %1681 = vmatpush.bf16.msra.mxu0 %v987
    %1682 = vmatpush.bf16.msra.mxu0 %v986
    %1683 = vmatmul.bf16.gmra.mxu0 %v1459
    %v1684 = vpop.f32.mrf.mxu0
    %v1685 = vadd.f32 %v1596, %v1684
    %v1686 = vpop.f32.mrf.mxu0
    %v1687 = vadd.f32 %v1598, %v1686
    %1688 = vmatmul.bf16.gmra.mxu0 %v1463
    %v1689 = vpop.f32.mrf.mxu0
    %v1690 = vadd.f32 %v1601, %v1689
    %v1691 = vpop.f32.mrf.mxu0
    %v1692 = vadd.f32 %v1603, %v1691
    %1693 = vmatmul.bf16.gmra.mxu0 %v1467
    %v1694 = vpop.f32.mrf.mxu0
    %v1695 = vadd.f32 %v1606, %v1694
    %v1696 = vpop.f32.mrf.mxu0
    %v1697 = vadd.f32 %v1608, %v1696
    %1698 = vmatmul.bf16.gmra.mxu0 %v1471
    %v1699 = vpop.f32.mrf.mxu0
    %v1700 = vadd.f32 %v1611, %v1699
    %v1701 = vpop.f32.mrf.mxu0
    %v1702 = vadd.f32 %v1613, %v1701
    %1703 = vmatmul.bf16.gmra.mxu0 %v1475
    %v1704 = vpop.f32.mrf.mxu0
    %v1705 = vadd.f32 %v1616, %v1704
    %v1706 = vpop.f32.mrf.mxu0
    %v1707 = vadd.f32 %v1618, %v1706
    %1708 = vmatmul.bf16.gmra.mxu0 %v1479
    %v1709 = vpop.f32.mrf.mxu0
    %v1710 = vadd.f32 %v1621, %v1709
    %v1711 = vpop.f32.mrf.mxu0
    %v1712 = vadd.f32 %v1623, %v1711
    %1713 = vmatmul.bf16.gmra.mxu0 %v1483
    %v1714 = vpop.f32.mrf.mxu0
    %v1715 = vadd.f32 %v1626, %v1714
    %v1716 = vpop.f32.mrf.mxu0
    %v1717 = vadd.f32 %v1628, %v1716
    %1718 = vmatmul.bf16.gmra.mxu0 %v1487
    %v1719 = vpop.f32.mrf.mxu0
    %v1720 = vadd.f32 %v1631, %v1719
    %v1721 = vpop.f32.mrf.mxu0
    %v1722 = vadd.f32 %v1633, %v1721
    %1723 = vmatmul.bf16.gmra.mxu0 %v1491
    %v1724 = vpop.f32.mrf.mxu0
    %v1725 = vadd.f32 %v1636, %v1724
    %v1726 = vpop.f32.mrf.mxu0
    %v1727 = vadd.f32 %v1638, %v1726
    %1728 = vmatmul.bf16.gmra.mxu0 %v1495
    %v1729 = vpop.f32.mrf.mxu0
    %v1730 = vadd.f32 %v1641, %v1729
    %v1731 = vpop.f32.mrf.mxu0
    %v1732 = vadd.f32 %v1643, %v1731
    %1733 = vmatmul.bf16.gmra.mxu0 %v1499
    %v1734 = vpop.f32.mrf.mxu0
    %v1735 = vadd.f32 %v1646, %v1734
    %v1736 = vpop.f32.mrf.mxu0
    %v1737 = vadd.f32 %v1648, %v1736
    %1738 = vmatmul.bf16.gmra.mxu0 %v1503
    %v1739 = vpop.f32.mrf.mxu0
    %v1740 = vadd.f32 %v1651, %v1739
    %v1741 = vpop.f32.mrf.mxu0
    %v1742 = vadd.f32 %v1653, %v1741
    %1743 = vmatmul.bf16.gmra.mxu0 %v1507
    %v1744 = vpop.f32.mrf.mxu0
    %v1745 = vadd.f32 %v1656, %v1744
    %v1746 = vpop.f32.mrf.mxu0
    %v1747 = vadd.f32 %v1658, %v1746
    %1748 = vmatmul.bf16.gmra.mxu0 %v1511
    %v1749 = vpop.f32.mrf.mxu0
    %v1750 = vadd.f32 %v1661, %v1749
    %v1751 = vpop.f32.mrf.mxu0
    %v1752 = vadd.f32 %v1663, %v1751
    %1753 = vmatmul.bf16.gmra.mxu0 %v1515
    %v1754 = vpop.f32.mrf.mxu0
    %v1755 = vadd.f32 %v1666, %v1754
    %v1756 = vpop.f32.mrf.mxu0
    %v1757 = vadd.f32 %v1668, %v1756
    %1758 = vmatmul.bf16.gmra.mxu0 %v1519
    %v1759 = vpop.f32.mrf.mxu0
    %v1760 = vadd.f32 %v1671, %v1759
    %v1761 = vpop.f32.mrf.mxu0
    %v1762 = vadd.f32 %v1673, %v1761
    %1763 = vdwg.mxu0
    %1764 = vmatpush.bf16.msra.mxu0 %v1001
    %1765 = vmatpush.bf16.msra.mxu0 %v1000
    %1766 = vmatpush.bf16.msra.mxu0 %v999
    %1767 = vmatpush.bf16.msra.mxu0 %v998
    %1768 = vmatpush.bf16.msra.mxu0 %v997
    %1769 = vmatpush.bf16.msra.mxu0 %v996
    %1770 = vmatpush.bf16.msra.mxu0 %v995
    %1771 = vmatpush.bf16.msra.mxu0 %v994
    %1772 = vmatmul.bf16.gmra.mxu0 %v1460
    %v1773 = vpop.f32.mrf.mxu0
    %v1774 = vadd.f32 %v1685, %v1773
    %v1775 = vpop.f32.mrf.mxu0
    %v1776 = vadd.f32 %v1687, %v1775
    %1777 = vmatmul.bf16.gmra.mxu0 %v1464
    %v1778 = vpop.f32.mrf.mxu0
    %v1779 = vadd.f32 %v1690, %v1778
    %v1780 = vpop.f32.mrf.mxu0
    %v1781 = vadd.f32 %v1692, %v1780
    %1782 = vmatmul.bf16.gmra.mxu0 %v1468
    %v1783 = vpop.f32.mrf.mxu0
    %v1784 = vadd.f32 %v1695, %v1783
    %v1785 = vpop.f32.mrf.mxu0
    %v1786 = vadd.f32 %v1697, %v1785
    %1787 = vmatmul.bf16.gmra.mxu0 %v1472
    %v1788 = vpop.f32.mrf.mxu0
    %v1789 = vadd.f32 %v1700, %v1788
    %v1790 = vpop.f32.mrf.mxu0
    %v1791 = vadd.f32 %v1702, %v1790
    %1792 = vmatmul.bf16.gmra.mxu0 %v1476
    %v1793 = vpop.f32.mrf.mxu0
    %v1794 = vadd.f32 %v1705, %v1793
    %v1795 = vpop.f32.mrf.mxu0
    %v1796 = vadd.f32 %v1707, %v1795
    %1797 = vmatmul.bf16.gmra.mxu0 %v1480
    %v1798 = vpop.f32.mrf.mxu0
    %v1799 = vadd.f32 %v1710, %v1798
    %v1800 = vpop.f32.mrf.mxu0
    %v1801 = vadd.f32 %v1712, %v1800
    %1802 = vmatmul.bf16.gmra.mxu0 %v1484
    %v1803 = vpop.f32.mrf.mxu0
    %v1804 = vadd.f32 %v1715, %v1803
    %v1805 = vpop.f32.mrf.mxu0
    %v1806 = vadd.f32 %v1717, %v1805
    %1807 = vmatmul.bf16.gmra.mxu0 %v1488
    %v1808 = vpop.f32.mrf.mxu0
    %v1809 = vadd.f32 %v1720, %v1808
    %v1810 = vpop.f32.mrf.mxu0
    %v1811 = vadd.f32 %v1722, %v1810
    %1812 = vmatmul.bf16.gmra.mxu0 %v1492
    %v1813 = vpop.f32.mrf.mxu0
    %v1814 = vadd.f32 %v1725, %v1813
    %v1815 = vpop.f32.mrf.mxu0
    %v1816 = vadd.f32 %v1727, %v1815
    %1817 = vmatmul.bf16.gmra.mxu0 %v1496
    %v1818 = vpop.f32.mrf.mxu0
    %v1819 = vadd.f32 %v1730, %v1818
    %v1820 = vpop.f32.mrf.mxu0
    %v1821 = vadd.f32 %v1732, %v1820
    %1822 = vmatmul.bf16.gmra.mxu0 %v1500
    %v1823 = vpop.f32.mrf.mxu0
    %v1824 = vadd.f32 %v1735, %v1823
    %v1825 = vpop.f32.mrf.mxu0
    %v1826 = vadd.f32 %v1737, %v1825
    %1827 = vmatmul.bf16.gmra.mxu0 %v1504
    %v1828 = vpop.f32.mrf.mxu0
    %v1829 = vadd.f32 %v1740, %v1828
    %v1830 = vpop.f32.mrf.mxu0
    %v1831 = vadd.f32 %v1742, %v1830
    %1832 = vmatmul.bf16.gmra.mxu0 %v1508
    %v1833 = vpop.f32.mrf.mxu0
    %v1834 = vadd.f32 %v1745, %v1833
    %v1835 = vpop.f32.mrf.mxu0
    %v1836 = vadd.f32 %v1747, %v1835
    %1837 = vmatmul.bf16.gmra.mxu0 %v1512
    %v1838 = vpop.f32.mrf.mxu0
    %v1839 = vadd.f32 %v1750, %v1838
    %v1840 = vpop.f32.mrf.mxu0
    %v1841 = vadd.f32 %v1752, %v1840
    %1842 = vmatmul.bf16.gmra.mxu0 %v1516
    %v1843 = vpop.f32.mrf.mxu0
    %v1844 = vadd.f32 %v1755, %v1843
    %v1845 = vpop.f32.mrf.mxu0
    %v1846 = vadd.f32 %v1757, %v1845
    %1847 = vmatmul.bf16.gmra.mxu0 %v1520
    %v1848 = vpop.f32.mrf.mxu0
    %v1849 = vadd.f32 %v1760, %v1848
    %v1850 = vpop.f32.mrf.mxu0
    %v1851 = vadd.f32 %v1762, %v1850
    %1852 = vdwg.mxu0
    %1853 = vmatpush.bf16.msra.mxu0 %v1009
    %1854 = vmatpush.bf16.msra.mxu0 %v1008
    %1855 = vmatpush.bf16.msra.mxu0 %v1007
    %1856 = vmatpush.bf16.msra.mxu0 %v1006
    %1857 = vmatpush.bf16.msra.mxu0 %v1005
    %1858 = vmatpush.bf16.msra.mxu0 %v1004
    %1859 = vmatpush.bf16.msra.mxu0 %v1003
    %1860 = vmatpush.bf16.msra.mxu0 %v1002
    %1861 = vmatmul.bf16.gmra.mxu0 %v1461
    %v1862 = vpop.f32.mrf.mxu0
    %v1863 = vadd.f32 %v1774, %v1862
    %v1864 = vpop.f32.mrf.mxu0
    %v1865 = vadd.f32 %v1776, %v1864
    %1866 = vmatmul.bf16.gmra.mxu0 %v1465
    %v1867 = vpop.f32.mrf.mxu0
    %v1868 = vadd.f32 %v1779, %v1867
    %v1869 = vpop.f32.mrf.mxu0
    %v1870 = vadd.f32 %v1781, %v1869
    %1871 = vmatmul.bf16.gmra.mxu0 %v1469
    %v1872 = vpop.f32.mrf.mxu0
    %v1873 = vadd.f32 %v1784, %v1872
    %v1874 = vpop.f32.mrf.mxu0
    %v1875 = vadd.f32 %v1786, %v1874
    %1876 = vmatmul.bf16.gmra.mxu0 %v1473
    %v1877 = vpop.f32.mrf.mxu0
    %v1878 = vadd.f32 %v1789, %v1877
    %v1879 = vpop.f32.mrf.mxu0
    %v1880 = vadd.f32 %v1791, %v1879
    %1881 = vmatmul.bf16.gmra.mxu0 %v1477
    %v1882 = vpop.f32.mrf.mxu0
    %v1883 = vadd.f32 %v1794, %v1882
    %v1884 = vpop.f32.mrf.mxu0
    %v1885 = vadd.f32 %v1796, %v1884
    %1886 = vmatmul.bf16.gmra.mxu0 %v1481
    %v1887 = vpop.f32.mrf.mxu0
    %v1888 = vadd.f32 %v1799, %v1887
    %v1889 = vpop.f32.mrf.mxu0
    %v1890 = vadd.f32 %v1801, %v1889
    %1891 = vmatmul.bf16.gmra.mxu0 %v1485
    %v1892 = vpop.f32.mrf.mxu0
    %v1893 = vadd.f32 %v1804, %v1892
    %v1894 = vpop.f32.mrf.mxu0
    %v1895 = vadd.f32 %v1806, %v1894
    %1896 = vmatmul.bf16.gmra.mxu0 %v1489
    %v1897 = vpop.f32.mrf.mxu0
    %v1898 = vadd.f32 %v1809, %v1897
    %v1899 = vpop.f32.mrf.mxu0
    %v1900 = vadd.f32 %v1811, %v1899
    %1901 = vmatmul.bf16.gmra.mxu0 %v1493
    %v1902 = vpop.f32.mrf.mxu0
    %v1903 = vadd.f32 %v1814, %v1902
    %v1904 = vpop.f32.mrf.mxu0
    %v1905 = vadd.f32 %v1816, %v1904
    %1906 = vmatmul.bf16.gmra.mxu0 %v1497
    %v1907 = vpop.f32.mrf.mxu0
    %v1908 = vadd.f32 %v1819, %v1907
    %v1909 = vpop.f32.mrf.mxu0
    %v1910 = vadd.f32 %v1821, %v1909
    %1911 = vmatmul.bf16.gmra.mxu0 %v1501
    %v1912 = vpop.f32.mrf.mxu0
    %v1913 = vadd.f32 %v1824, %v1912
    %v1914 = vpop.f32.mrf.mxu0
    %v1915 = vadd.f32 %v1826, %v1914
    %1916 = vmatmul.bf16.gmra.mxu0 %v1505
    %v1917 = vpop.f32.mrf.mxu0
    %v1918 = vadd.f32 %v1829, %v1917
    %v1919 = vpop.f32.mrf.mxu0
    %v1920 = vadd.f32 %v1831, %v1919
    %1921 = vmatmul.bf16.gmra.mxu0 %v1509
    %v1922 = vpop.f32.mrf.mxu0
    %v1923 = vadd.f32 %v1834, %v1922
    %v1924 = vpop.f32.mrf.mxu0
    %v1925 = vadd.f32 %v1836, %v1924
    %1926 = vmatmul.bf16.gmra.mxu0 %v1513
    %v1927 = vpop.f32.mrf.mxu0
    %v1928 = vadd.f32 %v1839, %v1927
    %v1929 = vpop.f32.mrf.mxu0
    %v1930 = vadd.f32 %v1841, %v1929
    %1931 = vmatmul.bf16.gmra.mxu0 %v1517
    %v1932 = vpop.f32.mrf.mxu0
    %v1933 = vadd.f32 %v1844, %v1932
    %v1934 = vpop.f32.mrf.mxu0
    %v1935 = vadd.f32 %v1846, %v1934
    %1936 = vmatmul.bf16.gmra.mxu0 %v1521
    %v1937 = vpop.f32.mrf.mxu0
    %v1938 = vadd.f32 %v1849, %v1937
    %v1939 = vpop.f32.mrf.mxu0
    %v1940 = vadd.f32 %v1851, %v1939
    %1941 = vdwg.mxu0
    %v1942 = vmax.f32 %v1863, 0.0
    %v1943 = vmax.f32 %v1865, 0.0
    %v1944 = vmax.f32 %v1868, 0.0
    %v1945 = vmax.f32 %v1870, 0.0
    %v1946 = vmax.f32 %v1873, 0.0
    %v1947 = vmax.f32 %v1875, 0.0
    %v1948 = vmax.f32 %v1878, 0.0
    %v1949 = vmax.f32 %v1880, 0.0
    %v1950 = vmax.f32 %v1883, 0.0
    %v1951 = vmax.f32 %v1885, 0.0
    %v1952 = vmax.f32 %v1888, 0.0
    %v1953 = vmax.f32 %v1890, 0.0
    %v1954 = vmax.f32 %v1893, 0.0
    %v1955 = vmax.f32 %v1895, 0.0
    %v1956 = vmax.f32 %v1898, 0.0
    %v1957 = vmax.f32 %v1900, 0.0
    %v1958 = vmax.f32 %v1903, 0.0
    %v1959 = vmax.f32 %v1905, 0.0
    %v1960 = vmax.f32 %v1908, 0.0
    %v1961 = vmax.f32 %v1910, 0.0
    %v1962 = vmax.f32 %v1913, 0.0
    %v1963 = vmax.f32 %v1915, 0.0
    %v1964 = vmax.f32 %v1918, 0.0
    %v1965 = vmax.f32 %v1920, 0.0
    %v1966 = vmax.f32 %v1923, 0.0
    %v1967 = vmax.f32 %v1925, 0.0
    %v1968 = vmax.f32 %v1928, 0.0
    %v1969 = vmax.f32 %v1930, 0.0
    %v1970 = vmax.f32 %v1933, 0.0
    %v1971 = vmax.f32 %v1935, 0.0
    %v1972 = vmax.f32 %v1938, 0.0
    %v1973 = vmax.f32 %v1940, 0.0
    %v1974 = vpack.c.bf16 %v1943, %v1942
    %v1975 = vpack.c.bf16 %v1945, %v1944
    %v1976 = vpack.c.bf16 %v1947, %v1946
    %v1977 = vpack.c.bf16 %v1949, %v1948
    %v1978 = vpack.c.bf16 %v1951, %v1950
    %v1979 = vpack.c.bf16 %v1953, %v1952
    %v1980 = vpack.c.bf16 %v1955, %v1954
    %v1981 = vpack.c.bf16 %v1957, %v1956
    %v1982 = vpack.c.bf16 %v1959, %v1958
    %v1983 = vpack.c.bf16 %v1961, %v1960
    %v1984 = vpack.c.bf16 %v1963, %v1962
    %v1985 = vpack.c.bf16 %v1965, %v1964
    %v1986 = vpack.c.bf16 %v1967, %v1966
    %v1987 = vpack.c.bf16 %v1969, %v1968
    %v1988 = vpack.c.bf16 %v1971, %v1970
    %v1989 = vpack.c.bf16 %v1973, %v1972
    %v1990 = vld [vmem:[%s3] sm:$0xff]
    %v1991 = vld [vmem:[%s3 + $0x8] sm:$0xff]
    %v1992 = vld [vmem:[%s3 + $0x10] sm:$0xff]
    %v1993 = vld [vmem:[%s3 + $0x18] sm:$0xff]
    %v1994 = vld [vmem:[%s3 + $0x20] sm:$0xff]
    %v1995 = vld [vmem:[%s3 + $0x28] sm:$0xff]
    %v1996 = vld [vmem:[%s3 + $0x30] sm:$0xff]
    %v1997 = vld [vmem:[%s3 + $0x38] sm:$0xff]
    %v1998 = vld [vmem:[%s3 + $0x40] sm:$0xff]
    %v1999 = vld [vmem:[%s3 + $0x48] sm:$0xff]
    %v2000 = vld [vmem:[%s3 + $0x50] sm:$0xff]
    %v2001 = vld [vmem:[%s3 + $0x58] sm:$0xff]
    %v2002 = vld [vmem:[%s3 + $0x60] sm:$0xff]
    %v2003 = vld [vmem:[%s3 + $0x68] sm:$0xff]
    %v2004 = vld [vmem:[%s3 + $0x70] sm:$0xff]
    %v2005 = vld [vmem:[%s3 + $0x78] sm:$0xff]
    %v2006 = vld [vmem:[%s8] sm:$0xff]
    %v2007 = vld [vmem:[%s8 + $0x8] sm:$0xff]
    %v2008 = vld [vmem:[%s8 + $0x10] sm:$0xff]
    %v2009 = vld [vmem:[%s8 + $0x18] sm:$0xff]
    %v2010 = vld [vmem:[%s8 + $0x20] sm:$0xff]
    %v2011 = vld [vmem:[%s8 + $0x28] sm:$0xff]
    %v2012 = vld [vmem:[%s8 + $0x30] sm:$0xff]
    %v2013 = vld [vmem:[%s8 + $0x38] sm:$0xff]
    %v2014 = vld [vmem:[%s8 + $0x40] sm:$0xff]
    %v2015 = vld [vmem:[%s8 + $0x48] sm:$0xff]
    %v2016 = vld [vmem:[%s8 + $0x50] sm:$0xff]
    %v2017 = vld [vmem:[%s8 + $0x58] sm:$0xff]
    %v2018 = vld [vmem:[%s8 + $0x60] sm:$0xff]
    %v2019 = vld [vmem:[%s8 + $0x68] sm:$0xff]
    %v2020 = vld [vmem:[%s8 + $0x70] sm:$0xff]
    %v2021 = vld [vmem:[%s8 + $0x78] sm:$0xff]
    %2023 = vset.pattern.permute.xlu0 2
    %2024 = vperm.xlu0 %2023, %v2006
    %v2025 = vpop.permute.xlu0 %2024
    %2028 = vset.pattern.permute.xlu0 2
    %2029 = vperm.xlu0 %2028, %v2007
    %v2030 = vpop.permute.xlu0 %2029
    %2033 = vset.pattern.permute.xlu0 2
    %2034 = vperm.xlu0 %2033, %v2008
    %v2035 = vpop.permute.xlu0 %2034
    %2038 = vset.pattern.permute.xlu0 2
    %2039 = vperm.xlu0 %2038, %v2009
    %v2040 = vpop.permute.xlu0 %2039
    %2043 = vset.pattern.permute.xlu0 2
    %2044 = vperm.xlu0 %2043, %v2010
    %v2045 = vpop.permute.xlu0 %2044
    %2048 = vset.pattern.permute.xlu0 2
    %2049 = vperm.xlu0 %2048, %v2011
    %v2050 = vpop.permute.xlu0 %2049
    %2053 = vset.pattern.permute.xlu0 2
    %2054 = vperm.xlu0 %2053, %v2012
    %v2055 = vpop.permute.xlu0 %2054
    %2058 = vset.pattern.permute.xlu0 2
    %2059 = vperm.xlu0 %2058, %v2013
    %v2060 = vpop.permute.xlu0 %2059
    %2063 = vset.pattern.permute.xlu0 2
    %2064 = vperm.xlu0 %2063, %v2014
    %v2065 = vpop.permute.xlu0 %2064
    %2068 = vset.pattern.permute.xlu0 2
    %2069 = vperm.xlu0 %2068, %v2015
    %v2070 = vpop.permute.xlu0 %2069
    %2073 = vset.pattern.permute.xlu0 2
    %2074 = vperm.xlu0 %2073, %v2016
    %v2075 = vpop.permute.xlu0 %2074
    %2078 = vset.pattern.permute.xlu0 2
    %2079 = vperm.xlu0 %2078, %v2017
    %v2080 = vpop.permute.xlu0 %2079
    %2083 = vset.pattern.permute.xlu0 2
    %2084 = vperm.xlu0 %2083, %v2018
    %v2085 = vpop.permute.xlu0 %2084
    %2088 = vset.pattern.permute.xlu0 2
    %2089 = vperm.xlu0 %2088, %v2019
    %v2090 = vpop.permute.xlu0 %2089
    %2093 = vset.pattern.permute.xlu0 2
    %2094 = vperm.xlu0 %2093, %v2020
    %v2095 = vpop.permute.xlu0 %2094
    %2098 = vset.pattern.permute.xlu0 2
    %2099 = vperm.xlu0 %2098, %v2021
    %v2100 = vpop.permute.xlu0 %2099
    %v2118 = vunpack.c.l.b16 %v1990
    %v2119 = vunpack.c.h.b16 %v1990
    %v2120 = vunpack.c.l.b16 %v1991
    %v2121 = vunpack.c.h.b16 %v1991
    %v2122 = vunpack.c.l.b16 %v1992
    %v2123 = vunpack.c.h.b16 %v1992
    %v2124 = vunpack.c.l.b16 %v1993
    %v2125 = vunpack.c.h.b16 %v1993
    %v2126 = vunpack.c.l.b16 %v1994
    %v2127 = vunpack.c.h.b16 %v1994
    %v2128 = vunpack.c.l.b16 %v1995
    %v2129 = vunpack.c.h.b16 %v1995
    %v2130 = vunpack.c.l.b16 %v1996
    %v2131 = vunpack.c.h.b16 %v1996
    %v2132 = vunpack.c.l.b16 %v1997
    %v2133 = vunpack.c.h.b16 %v1997
    %v2134 = vunpack.c.l.b16 %v1998
    %v2135 = vunpack.c.h.b16 %v1998
    %v2136 = vunpack.c.l.b16 %v1999
    %v2137 = vunpack.c.h.b16 %v1999
    %v2138 = vunpack.c.l.b16 %v2000
    %v2139 = vunpack.c.h.b16 %v2000
    %v2140 = vunpack.c.l.b16 %v2001
    %v2141 = vunpack.c.h.b16 %v2001
    %v2142 = vunpack.c.l.b16 %v2002
    %v2143 = vunpack.c.h.b16 %v2002
    %v2144 = vunpack.c.l.b16 %v2003
    %v2145 = vunpack.c.h.b16 %v2003
    %v2146 = vunpack.c.l.b16 %v2004
    %v2147 = vunpack.c.h.b16 %v2004
    %v2148 = vunpack.c.l.b16 %v2005
    %v2149 = vunpack.c.h.b16 %v2005
    %v2150 = vpack.c.b16 %v2120, %v2118
    %v2151 = vpack.c.b16 %v2121, %v2119
    %v2152 = vpack.c.b16 %v2124, %v2122
    %v2153 = vpack.c.b16 %v2125, %v2123
    %v2154 = vpack.c.b16 %v2128, %v2126
    %v2155 = vpack.c.b16 %v2129, %v2127
    %v2156 = vpack.c.b16 %v2132, %v2130
    %v2157 = vpack.c.b16 %v2133, %v2131
    %v2158 = vpack.c.b16 %v2136, %v2134
    %v2159 = vpack.c.b16 %v2137, %v2135
    %v2160 = vpack.c.b16 %v2140, %v2138
    %v2161 = vpack.c.b16 %v2141, %v2139
    %v2162 = vpack.c.b16 %v2144, %v2142
    %v2163 = vpack.c.b16 %v2145, %v2143
    %v2164 = vpack.c.b16 %v2148, %v2146
    %v2165 = vpack.c.b16 %v2149, %v2147
    %2182 = vmatpush.bf16.msra.mxu0 %v1981
    %2183 = vmatpush.bf16.msra.mxu0 %v1980
    %2184 = vmatpush.bf16.msra.mxu0 %v1979
    %2185 = vmatpush.bf16.msra.mxu0 %v1978
    %2186 = vmatpush.bf16.msra.mxu0 %v1977
    %2187 = vmatpush.bf16.msra.mxu0 %v1976
    %2188 = vmatpush.bf16.msra.mxu0 %v1975
    %2189 = vmatpush.bf16.msra.mxu0 %v1974
    %2190 = vmatmul.bf16.gmra.mxu0 %v2150
    %v2191 = vpop.f32.mrf.mxu0
    %v2192 = vadd.f32 %v2025, %v2191
    %v2193 = vpop.f32.mrf.mxu0
    %v2194 = vadd.f32 %v2030, %v2193
    %2195 = vmatmul.bf16.gmra.mxu0 %v2152
    %v2196 = vpop.f32.mrf.mxu0
    %v2197 = vadd.f32 %v2035, %v2196
    %v2198 = vpop.f32.mrf.mxu0
    %v2199 = vadd.f32 %v2040, %v2198
    %2200 = vmatmul.bf16.gmra.mxu0 %v2154
    %v2201 = vpop.f32.mrf.mxu0
    %v2202 = vadd.f32 %v2045, %v2201
    %v2203 = vpop.f32.mrf.mxu0
    %v2204 = vadd.f32 %v2050, %v2203
    %2205 = vmatmul.bf16.gmra.mxu0 %v2156
    %v2206 = vpop.f32.mrf.mxu0
    %v2207 = vadd.f32 %v2055, %v2206
    %v2208 = vpop.f32.mrf.mxu0
    %v2209 = vadd.f32 %v2060, %v2208
    %2210 = vmatmul.bf16.gmra.mxu0 %v2158
    %v2211 = vpop.f32.mrf.mxu0
    %v2212 = vadd.f32 %v2065, %v2211
    %v2213 = vpop.f32.mrf.mxu0
    %v2214 = vadd.f32 %v2070, %v2213
    %2215 = vmatmul.bf16.gmra.mxu0 %v2160
    %v2216 = vpop.f32.mrf.mxu0
    %v2217 = vadd.f32 %v2075, %v2216
    %v2218 = vpop.f32.mrf.mxu0
    %v2219 = vadd.f32 %v2080, %v2218
    %2220 = vmatmul.bf16.gmra.mxu0 %v2162
    %v2221 = vpop.f32.mrf.mxu0
    %v2222 = vadd.f32 %v2085, %v2221
    %v2223 = vpop.f32.mrf.mxu0
    %v2224 = vadd.f32 %v2090, %v2223
    %2225 = vmatmul.bf16.gmra.mxu0 %v2164
    %v2226 = vpop.f32.mrf.mxu0
    %v2227 = vadd.f32 %v2095, %v2226
    %v2228 = vpop.f32.mrf.mxu0
    %v2229 = vadd.f32 %v2100, %v2228
    %2230 = vdwg.mxu0
    %2231 = vmatpush.bf16.msra.mxu0 %v1989
    %2232 = vmatpush.bf16.msra.mxu0 %v1988
    %2233 = vmatpush.bf16.msra.mxu0 %v1987
    %2234 = vmatpush.bf16.msra.mxu0 %v1986
    %2235 = vmatpush.bf16.msra.mxu0 %v1985
    %2236 = vmatpush.bf16.msra.mxu0 %v1984
    %2237 = vmatpush.bf16.msra.mxu0 %v1983
    %2238 = vmatpush.bf16.msra.mxu0 %v1982
    %2239 = vmatmul.bf16.gmra.mxu0 %v2151
    %v2240 = vpop.f32.mrf.mxu0
    %v2241 = vadd.f32 %v2192, %v2240
    %v2242 = vpop.f32.mrf.mxu0
    %v2243 = vadd.f32 %v2194, %v2242
    %2244 = vmatmul.bf16.gmra.mxu0 %v2153
    %v2245 = vpop.f32.mrf.mxu0
    %v2246 = vadd.f32 %v2197, %v2245
    %v2247 = vpop.f32.mrf.mxu0
    %v2248 = vadd.f32 %v2199, %v2247
    %2249 = vmatmul.bf16.gmra.mxu0 %v2155
    %v2250 = vpop.f32.mrf.mxu0
    %v2251 = vadd.f32 %v2202, %v2250
    %v2252 = vpop.f32.mrf.mxu0
    %v2253 = vadd.f32 %v2204, %v2252
    %2254 = vmatmul.bf16.gmra.mxu0 %v2157
    %v2255 = vpop.f32.mrf.mxu0
    %v2256 = vadd.f32 %v2207, %v2255
    %v2257 = vpop.f32.mrf.mxu0
    %v2258 = vadd.f32 %v2209, %v2257
    %2259 = vmatmul.bf16.gmra.mxu0 %v2159
    %v2260 = vpop.f32.mrf.mxu0
    %v2261 = vadd.f32 %v2212, %v2260
    %v2262 = vpop.f32.mrf.mxu0
    %v2263 = vadd.f32 %v2214, %v2262
    %2264 = vmatmul.bf16.gmra.mxu0 %v2161
    %v2265 = vpop.f32.mrf.mxu0
    %v2266 = vadd.f32 %v2217, %v2265
    %v2267 = vpop.f32.mrf.mxu0
    %v2268 = vadd.f32 %v2219, %v2267
    %2269 = vmatmul.bf16.gmra.mxu0 %v2163
    %v2270 = vpop.f32.mrf.mxu0
    %v2271 = vadd.f32 %v2222, %v2270
    %v2272 = vpop.f32.mrf.mxu0
    %v2273 = vadd.f32 %v2224, %v2272
    %2274 = vmatmul.bf16.gmra.mxu0 %v2165
    %v2275 = vpop.f32.mrf.mxu0
    %v2276 = vadd.f32 %v2227, %v2275
    %v2277 = vpop.f32.mrf.mxu0
    %v2278 = vadd.f32 %v2229, %v2277
    %2279 = vdwg.mxu0
    %v2280 = vmax.f32 %v2241, 0.0
    %v2281 = vmax.f32 %v2243, 0.0
    %v2282 = vmax.f32 %v2246, 0.0
    %v2283 = vmax.f32 %v2248, 0.0
    %v2284 = vmax.f32 %v2251, 0.0
    %v2285 = vmax.f32 %v2253, 0.0
    %v2286 = vmax.f32 %v2256, 0.0
    %v2287 = vmax.f32 %v2258, 0.0
    %v2288 = vmax.f32 %v2261, 0.0
    %v2289 = vmax.f32 %v2263, 0.0
    %v2290 = vmax.f32 %v2266, 0.0
    %v2291 = vmax.f32 %v2268, 0.0
    %v2292 = vmax.f32 %v2271, 0.0
    %v2293 = vmax.f32 %v2273, 0.0
    %v2294 = vmax.f32 %v2276, 0.0
    %v2295 = vmax.f32 %v2278, 0.0
    %v2296 = vpack.c.bf16 %v2281, %v2280
    %v2297 = vpack.c.bf16 %v2283, %v2282
    %v2298 = vpack.c.bf16 %v2285, %v2284
    %v2299 = vpack.c.bf16 %v2287, %v2286
    %v2300 = vpack.c.bf16 %v2289, %v2288
    %v2301 = vpack.c.bf16 %v2291, %v2290
    %v2302 = vpack.c.bf16 %v2293, %v2292
    %v2303 = vpack.c.bf16 %v2295, %v2294
    %v2304 = vld [vmem:[%s4] sm:$0xf]
    %v2305 = vld [vmem:[%s4 + $0x4] sm:$0xf]
    %v2306 = vld [vmem:[%s4 + $0x8] sm:$0xf]
    %v2307 = vld [vmem:[%s4 + $0xc] sm:$0xf]
    %v2308 = vld [vmem:[%s4 + $0x10] sm:$0xf]
    %v2309 = vld [vmem:[%s4 + $0x14] sm:$0xf]
    %v2310 = vld [vmem:[%s4 + $0x18] sm:$0xf]
    %v2311 = vld [vmem:[%s4 + $0x1c] sm:$0xf]
    %v2312 = vld [vmem:[%s8] sm:$0xff]
    %v2313 = vld [vmem:[%s8 + $0x8] sm:$0xff]
    %v2314 = vld [vmem:[%s8 + $0x10] sm:$0xff]
    %v2315 = vld [vmem:[%s8 + $0x18] sm:$0xff]
    %v2316 = vld [vmem:[%s8 + $0x20] sm:$0xff]
    %v2317 = vld [vmem:[%s8 + $0x28] sm:$0xff]
    %v2318 = vld [vmem:[%s8 + $0x30] sm:$0xff]
    %v2319 = vld [vmem:[%s8 + $0x38] sm:$0xff]
    %2321 = vset.pattern.permute.xlu0 3
    %2322 = vperm.xlu0 %2321, %v2312
    %v2323 = vpop.permute.xlu0 %2322
    %2326 = vset.pattern.permute.xlu0 3
    %2327 = vperm.xlu0 %2326, %v2313
    %v2328 = vpop.permute.xlu0 %2327
    %2331 = vset.pattern.permute.xlu0 3
    %2332 = vperm.xlu0 %2331, %v2314
    %v2333 = vpop.permute.xlu0 %2332
    %2336 = vset.pattern.permute.xlu0 3
    %2337 = vperm.xlu0 %2336, %v2315
    %v2338 = vpop.permute.xlu0 %2337
    %2341 = vset.pattern.permute.xlu0 3
    %2342 = vperm.xlu0 %2341, %v2316
    %v2343 = vpop.permute.xlu0 %2342
    %2346 = vset.pattern.permute.xlu0 3
    %2347 = vperm.xlu0 %2346, %v2317
    %v2348 = vpop.permute.xlu0 %2347
    %2351 = vset.pattern.permute.xlu0 3
    %2352 = vperm.xlu0 %2351, %v2318
    %v2353 = vpop.permute.xlu0 %2352
    %2356 = vset.pattern.permute.xlu0 3
    %2357 = vperm.xlu0 %2356, %v2319
    %v2358 = vpop.permute.xlu0 %2357
    %v2368 = vunpack.c.l.b16 %v2304
    %v2369 = vunpack.c.l.b16 %v2305
    %v2370 = vunpack.c.l.b16 %v2306
    %v2371 = vunpack.c.l.b16 %v2307
    %v2372 = vunpack.c.l.b16 %v2308
    %v2373 = vunpack.c.l.b16 %v2309
    %v2374 = vunpack.c.l.b16 %v2310
    %v2375 = vunpack.c.l.b16 %v2311
    %v2376 = vpack.c.b16 %v2369, %v2368
    %v2377 = vpack.c.b16 %v2371, %v2370
    %v2378 = vpack.c.b16 %v2373, %v2372
    %v2379 = vpack.c.b16 %v2375, %v2374
    %2384 = vmatpush.bf16.msra.mxu0 %v2303
    %2385 = vmatpush.bf16.msra.mxu0 %v2302
    %2386 = vmatpush.bf16.msra.mxu0 %v2301
    %2387 = vmatpush.bf16.msra.mxu0 %v2300
    %2388 = vmatpush.bf16.msra.mxu0 %v2299
    %2389 = vmatpush.bf16.msra.mxu0 %v2298
    %2390 = vmatpush.bf16.msra.mxu0 %v2297
    %2391 = vmatpush.bf16.msra.mxu0 %v2296
    %2392 = vmatmul.bf16.gmra.mxu0 %v2376
    %v2393 = vpop.f32.mrf.mxu0
    %v2394 = vadd.f32 %v2323, %v2393
    %v2395 = vpop.f32.mrf.mxu0
    %v2396 = vadd.f32 %v2328, %v2395
    %2397 = vmatmul.bf16.gmra.mxu0 %v2377
    %v2398 = vpop.f32.mrf.mxu0
    %v2399 = vadd.f32 %v2333, %v2398
    %v2400 = vpop.f32.mrf.mxu0
    %v2401 = vadd.f32 %v2338, %v2400
    %2402 = vmatmul.bf16.gmra.mxu0 %v2378
    %v2403 = vpop.f32.mrf.mxu0
    %v2404 = vadd.f32 %v2343, %v2403
    %v2405 = vpop.f32.mrf.mxu0
    %v2406 = vadd.f32 %v2348, %v2405
    %2407 = vmatmul.bf16.gmra.mxu0 %v2379
    %v2408 = vpop.f32.mrf.mxu0
    %v2409 = vadd.f32 %v2353, %v2408
    %v2410 = vpop.f32.mrf.mxu0
    %v2411 = vadd.f32 %v2358, %v2410
    %2412 = vdwg.mxu0
    %v2413 = vmax.f32 %v2394, 0.0
    %v2414 = vmax.f32 %v2396, 0.0
    %v2415 = vmax.f32 %v2399, 0.0
    %v2416 = vmax.f32 %v2401, 0.0
    %v2417 = vmax.f32 %v2404, 0.0
    %v2418 = vmax.f32 %v2406, 0.0
    %v2419 = vmax.f32 %v2409, 0.0
    %v2420 = vmax.f32 %v2411, 0.0
    %v2421 = vpack.c.bf16 %v2414, %v2413
    %v2422 = vpack.c.bf16 %v2416, %v2415
    %v2423 = vpack.c.bf16 %v2418, %v2417
    %v2424 = vpack.c.bf16 %v2420, %v2419
    %v2425 = vld [vmem:[%s5] sm:$0xf]
    %v2426 = vld [vmem:[%s5 + $0x4] sm:$0xf]
    %v2427 = vld [vmem:[%s5 + $0x8] sm:$0xf]
    %v2428 = vld [vmem:[%s5 + $0xc] sm:$0xf]
    %v2429 = vld [vmem:[%s8] sm:$0xff]
    %v2430 = vld [vmem:[%s8 + $0x8] sm:$0xff]
    %v2431 = vld [vmem:[%s8 + $0x10] sm:$0xff]
    %v2432 = vld [vmem:[%s8 + $0x18] sm:$0xff]
    %2434 = vset.pattern.permute.xlu0 4
    %2435 = vperm.xlu0 %2434, %v2429
    %v2436 = vpop.permute.xlu0 %2435
    %2439 = vset.pattern.permute.xlu0 4
    %2440 = vperm.xlu0 %2439, %v2430
    %v2441 = vpop.permute.xlu0 %2440
    %2444 = vset.pattern.permute.xlu0 4
    %2445 = vperm.xlu0 %2444, %v2431
    %v2446 = vpop.permute.xlu0 %2445
    %2449 = vset.pattern.permute.xlu0 4
    %2450 = vperm.xlu0 %2449, %v2432
    %v2451 = vpop.permute.xlu0 %2450
    %v2457 = vunpack.c.l.b16 %v2425
    %v2458 = vunpack.c.l.b16 %v2426
    %v2459 = vunpack.c.l.b16 %v2427
    %v2460 = vunpack.c.l.b16 %v2428
    %v2461 = vpack.c.b16 %v2458, %v2457
    %v2462 = vpack.c.b16 %v2460, %v2459
    %vm2463 = vcmask 523264
    %v2465 = vsel %vm2463, %v2461, 0
    %v2468 = vsel %vm2463, %v2462, 0
    %2470 = vmatpush.bf16.msra.mxu0 0
    %2471 = vmatpush.bf16.msra.mxu0 0
    %2472 = vmatpush.bf16.msra.mxu0 0
    %2473 = vmatpush.bf16.msra.mxu0 0
    %2474 = vmatpush.bf16.msra.mxu0 %v2424
    %2475 = vmatpush.bf16.msra.mxu0 %v2423
    %2476 = vmatpush.bf16.msra.mxu0 %v2422
    %2477 = vmatpush.bf16.msra.mxu0 %v2421
    %2478 = vmatmul.bf16.gmra.mxu0 %v2465
    %v2479 = vpop.f32.mrf.mxu0
    %v2480 = vadd.f32 %v2436, %v2479
    %v2481 = vpop.f32.mrf.mxu0
    %v2482 = vadd.f32 %v2441, %v2481
    %2483 = vmatmul.bf16.gmra.mxu0 %v2468
    %v2484 = vpop.f32.mrf.mxu0
    %v2485 = vadd.f32 %v2446, %v2484
    %v2486 = vpop.f32.mrf.mxu0
    %v2487 = vadd.f32 %v2451, %v2486
    %2488 = vdwg.mxu0
    %v2489 = vmax.f32 %v2480, 0.0
    %v2490 = vmax.f32 %v2482, 0.0
    %v2491 = vmax.f32 %v2485, 0.0
    %v2492 = vmax.f32 %v2487, 0.0
    %v2493 = vpack.c.bf16 %v2490, %v2489
    %v2494 = vpack.c.bf16 %v2492, %v2491
    %v2495 = vld [vmem:[%s6] sm:$0xf]
    %v2496 = vld [vmem:[%s6 + $0x4] sm:$0xf]
    %v2497 = vld [vmem:[%s8] sm:$0xff]
    %v2498 = vld [vmem:[%s8 + $0x8] sm:$0xff]
    %2500 = vset.pattern.permute.xlu0 5
    %2501 = vperm.xlu0 %2500, %v2497
    %v2502 = vpop.permute.xlu0 %2501
    %2505 = vset.pattern.permute.xlu0 5
    %2506 = vperm.xlu0 %2505, %v2498
    %v2507 = vpop.permute.xlu0 %2506
    %v2511 = vunpack.c.l.b16 %v2495
    %v2512 = vunpack.c.l.b16 %v2496
    %v2513 = vpack.c.b16 %v2512, %v2511
    %v2515 = vsel %vm648, %v2513, 0
    %2517 = vmatpush.bf16.msra.mxu0 0
    %2518 = vmatpush.bf16.msra.mxu0 0
    %2519 = vmatpush.bf16.msra.mxu0 0
    %2520 = vmatpush.bf16.msra.mxu0 0
    %2521 = vmatpush.bf16.msra.mxu0 0
    %2522 = vmatpush.bf16.msra.mxu0 0
    %2523 = vmatpush.bf16.msra.mxu0 %v2494
    %2524 = vmatpush.bf16.msra.mxu0 %v2493
    %2525 = vmatmul.bf16.gmra.mxu0 %v2515
    %v2526 = vpop.f32.mrf.mxu0
    %v2527 = vadd.f32 %v2502, %v2526
    %v2528 = vpop.f32.mrf.mxu0
    %v2529 = vadd.f32 %v2507, %v2528
    %2530 = vdwg.mxu0
    %v2531 = vmax.f32 %v2527, 0.0
    %v2532 = vmax.f32 %v2529, 0.0
    %v2533 = vpack.c.bf16 %v2531, %v2531
    %v2534 = vpack.c.bf16 %v2532, %v2532
    %v2535 = vld [vmem:[%s7] sm:$0xff]
    %v2536 = vld [vmem:[%s7 + $0x8] sm:$0xff]
    %v2537 = vld [vmem:[%s8] sm:$0x1]
    %v2538 = vunpack.c.l.bf16 %v2533
    %v2539 = vunpack.c.l.bf16 %v2534
    %2541 = vset.pattern.permute.xlu0 0
    %2542 = vperm.xlu0 %2541, %v2535
    %v2543 = vpop.permute.xlu0 %2542
    %2546 = vset.pattern.permute.xlu0 0
    %2547 = vperm.xlu0 %2546, %v2536
    %v2548 = vpop.permute.xlu0 %2547
    %v2550 = vmul.f32 %v2538, %v2543
    %v2551 = vmul.f32 %v2539, %v2548
    %v2552 = vadd.f32 %v2550, %v2551
    %v2553 = vrot.slane %v2552, 4
    %v2554 = vadd.f32 %v2552, %v2553
    %v2555 = vrot.slane %v2554, 2
    %v2556 = vadd.f32 %v2554, %v2555
    %v2557 = vrot.slane %v2556, 1
    %v2558 = vadd.f32 %v2556, %v2557
    %2560 = vset.pattern.permute.xlu0 6
    %2561 = vperm.xlu0 %2560, %v2537
    %v2562 = vpop.permute.xlu0 %2561
    %v2564 = vadd.f32 %v2558, %v2562
    %2565 = vst [vmem:[#allocation2] sm:$0x1] %v2564
    // Predicated region
    $region38: #{tpu_custom_call.1} parent=1 // pred_check
      _
    $region39: #{tpu_custom_call.1} parent=1 // pred_check_branch
      %2567 = sbr.rel (0) target = $region41
    $region40: #{tpu_custom_call.1} parent=1 // pred_region
      %2569 = vsyncadd [#allocation3], 0
      %s2571 = sshll.u32 [#allocation2], 4
      %s2572 = int_to_ptr.vmem [resolvable:$true] %s2571
      %s2573 = sshll.u32 %s9, 4
      %s2574 = int_to_ptr.hbm [resolvable:$true] %s2573
      %2576 = dma.vmem_to_hbm [thread:$0]  %s2572, 16, %s2574, [#allocation3]
    $region41: #{tpu_custom_call.1} parent=1 // pred_fallthru
      _
    // Predicated region
    $region42: #{tpu_custom_call.1} parent=1 // pred_check
      _
    $region43: #{tpu_custom_call.1} parent=1 // pred_check_branch
      %2578 = sbr.rel (0) target = $region45
    $region44: #{tpu_custom_call.1} parent=1 // pred_region
      %2580 = dma.done [#allocation3], 16
    $region45: #{tpu_custom_call.1} parent=1 // pred_fallthru
      _
    %2581 = vsyncpa [#allocation3], 1

</llo_original>
